<compile_context>
chip_gen: v7x
topology: tpu7x:2x2x1
jax: 0.10.0
libtpu: 0.0.40
codegen_flags: <defaults>
</compile_context>

<pallas_src>
import jax
import jax.numpy as jnp
from jax.experimental import pallas as pl
from jax.experimental.pallas import tpu as pltpu


def _round_up(x, m):
    return ((x + m - 1) // m) * m


def _pick_tile(total, cap, align):
    """Largest tile <= cap that divides `total` and is a multiple of `align`.

    Falls back to `total` itself (a full-dim block is always a legal
    block-shape entry)."""
    if total <= cap:
        return total
    t = (cap // align) * align
    while t >= align:
        if total % t == 0:
            return t
        t -= align
    return total


def _vmem_capacity_bytes():
    try:
        info = pltpu.get_tpu_info()
        cap = getattr(info, "vmem_capacity_bytes", None)
        if cap:
            return int(cap)
    except Exception:
        pass
    return 64 * 1024 * 1024  # conservative fallback (v7x per-TC VMEM)


def _fused_step(x_ref, w1_ref, b1_ref, w2_ref, acc, k):
    """One I-chunk of the fused MLP: relu(x @ W1_k + b1_k) @ W2_k + acc."""
    ti = w1_ref.shape[1]
    i_total = b1_ref.shape[1]

    # GEMM 1: cast x to the (bf16) weight dtype in-VMEM, f32 accumulation.
    x = x_ref[...].astype(w1_ref.dtype)
    h = jnp.dot(x, w1_ref[...], preferred_element_type=jnp.float32)

    # Bias (+ ReLU) in f32 on the VPU; bias chunk sliced from the resident
    # (1, I) block (loaded once for the whole kernel).
    if ti == i_total:
        b_chunk = b1_ref[...]
    else:
        off = pl.multiple_of(k * ti, 128)
        b_chunk = b1_ref[:, pl.ds(off, ti)]
    h = jnp.maximum(h + b_chunk, 0.0)

    # GEMM 2: back to the weight dtype for the MXU, accumulate f32 partials.
    return acc + jnp.dot(h.astype(w2_ref.dtype), w2_ref[...],
                         preferred_element_type=jnp.float32)


def mlp_kernel_out_acc(x_ref, w1_ref, b1_ref, w2_ref, o_ref):
    """f32-output path: accumulate directly into the resident output block."""
    k = pl.program_id(2)

    @pl.when(k == 0)
    def _():
        o_ref[...] = jnp.zeros_like(o_ref)

    o_ref[...] = _fused_step(x_ref, w1_ref, b1_ref, w2_ref, o_ref[...], k)


def mlp_kernel_scratch_acc(x_ref, w1_ref, b1_ref, w2_ref, o_ref, acc_ref):
    """Narrow-output path: f32 scratch accumulator, cast once at the end."""
    k = pl.program_id(2)

    @pl.when(k == 0)
    def _():
        acc_ref[...] = jnp.zeros_like(acc_ref)

    acc_ref[...] = _fused_step(x_ref, w1_ref, b1_ref, w2_ref, acc_ref[...], k)

    @pl.when(k == pl.num_programs(2) - 1)
    def _():
        o_ref[...] = acc_ref[...].astype(o_ref.dtype)


def mlp_pallas(x, w1_t, b1, w2_t, *, tm=None, ti=None, tn=None, out_dtype=None):
    """Fused MLP: relu(x @ w1_t + b1) @ w2_t.

    x:    (B, D)           activations (any float dtype; cast in-kernel)
    w1_t: (D, I)           dense_1 weight, pre-transposed (bf16 recommended)
    b1:   (1, I)           dense_1 bias (f32)
    w2_t: (I, D)           dense_2 weight, pre-transposed (bf16 recommended)
    """
    B, D = x.shape
    D_in, I = w1_t.shape
    assert D_in == D and w2_t.shape == (I, D) and b1.shape == (1, I)

    out_dtype = jnp.dtype(x.dtype if out_dtype is None else out_dtype)

    # ---- tile selection ----------------------------------------------------
    # Batch tile: large for big batches (amortizes weight streaming); a single
    # full-dim block for small/odd batches (zero padded MXU work, weights are
    # streamed exactly once).
    if tm is None:
        cap = 512 if B >= 512 else 256
        if B <= cap:
            tm = B                                   # full-dim block: always legal
        else:
            n_bt = pl.cdiv(B, cap)
            tm = _round_up(pl.cdiv(B, n_bt), 8)      # minimize padded rows
    tm = min(tm, B)

    # I (reduction) tile: fewer reduction steps -> fewer accumulator RMWs and
    # less per-step pipeline overhead.  128-aligned (lane dim of the W1 chunk).
    if ti is None:
        ti = _pick_tile(I, 512, 128)
    assert I % ti == 0
    n_i = I // ti

    # Output-D tile: bounds the VMEM footprint independent of model width and
    # gives the second v7x TensorCore parallel work for single-batch-tile
    # shapes.  tn == D (common for small D) means zero GEMM-1 recompute.
    if tn is None:
        tn = _pick_tile(D, 1024, 128)
    assert D % tn == 0
    n_d = D // tn

    n_b = pl.cdiv(B, tm)
    grid = (n_b, n_d, n_i)

    # ---- kernel / scratch choice -------------------------------------------
    if out_dtype == jnp.dtype(jnp.float32):
        kernel = mlp_kernel_out_acc
        scratch_shapes = []
        acc_bytes = 0
    else:
        kernel = mlp_kernel_scratch_acc
        scratch_shapes = [pltpu.VMEM((tm, tn), jnp.float32)]
        acc_bytes = tm * tn * 4

    # ---- VMEM budget (generation aware) -------------------------------------
    x_b = jnp.dtype(x.dtype).itemsize
    w_b = jnp.dtype(w1_t.dtype).itemsize
    o_b = out_dtype.itemsize
    step_bytes = (
        2 * tm * D * x_b          # x tile (double-buffered)
        + 2 * D * ti * w_b        # W1^T chunk
        + 2 * I * 4               # resident bias block
        + 2 * ti * tn * w_b       # W2^T chunk
        + 2 * tm * tn * o_b       # output tile
        + acc_bytes               # f32 scratch (narrow-output path only)
        + tm * ti * 4             # headroom for the (tm, ti) f32 intermediate
    )
    vmem_cap = _vmem_capacity_bytes()
    limit_cap = (40 << 20) if vmem_cap <= (64 << 20) else (96 << 20)
    vmem_limit = int(min(max(step_bytes, 32 << 20), limit_cap))

    # ---- cost estimate (weights re-streamed per batch/D tile) ---------------
    flops = 2 * B * D * I * n_d + 2 * B * I * D
    bytes_accessed = (
        n_b * tm * D * x_b            # x: fetched once per batch tile
        + n_b * n_d * D * I * w_b     # W1: once per (batch tile, D tile)
        + n_b * I * D * w_b           # W2: once per batch tile
        + I * 4                       # bias: fetched once
        + B * D * o_b                 # output write
    )
    cost = pl.CostEstimate(flops=int(flops), transcendentals=0,
                           bytes_accessed=int(bytes_accessed))

    return pl.pallas_call(
        kernel,
        out_shape=jax.ShapeDtypeStruct((B, D), out_dtype),
        grid_spec=pltpu.PrefetchScalarGridSpec(
            num_scalar_prefetch=0,
            grid=grid,
            in_specs=[
                pl.BlockSpec((tm, D), lambda i, n, k: (i, 0)),   # x tile
                pl.BlockSpec((D, ti), lambda i, n, k: (0, k)),   # W1^T chunk
                pl.BlockSpec((1, I), lambda i, n, k: (0, 0)),    # b1 (resident)
                pl.BlockSpec((ti, tn), lambda i, n, k: (k, n)),  # W2^T chunk
            ],
            out_specs=pl.BlockSpec((tm, tn), lambda i, n, k: (i, n)),
            scratch_shapes=scratch_shapes,
        ),
        compiler_params=pltpu.CompilerParams(
            dimension_semantics=("parallel", "parallel", "arbitrary"),
            vmem_limit_bytes=vmem_limit),
        cost_estimate=cost,
    )(x, w1_t, b1, w2_t)


def mlp_ref(x, w1_t, b1, w2_t):
    h = jnp.maximum(x @ w1_t + b1, 0.0)
    return h @ w2_t


if __name__ == "__main__":
    # Small shapes consistent with the module (dim -> 2*dim -> dim).
    # B deliberately not a multiple of 8/256 to exercise the no-pad,
    # full-dim-batch-block path.
    B, D = 300, 256
    I = 2 * D

    key = jax.random.PRNGKey(0)
    kx, kw1, kb1, kw2 = jax.random.split(key, 4)

    x = jax.random.normal(kx, (B, D), dtype=jnp.float32)

    # PyTorch Linear parameter shapes: W1 (I, D), b1 (I,), W2 (D, I).
    w1 = jax.random.normal(kw1, (I, D), dtype=jnp.float32) * 0.02
    b1 = jax.random.normal(kb1, (I,), dtype=jnp.float32) * 0.02
    w2 = jax.random.normal(kw2, (D, I), dtype=jnp.float32) * 0.02

    # Parameter prep (done ONCE, not per call): transpose to (in, out) and
    # pre-cast the GEMM operands to bf16; bias stays f32 for the f32 epilogue.
    w1_t_bf = w1.T.astype(jnp.bfloat16)     # (D, I)
    w2_t_bf = w2.T.astype(jnp.bfloat16)     # (I, D)
    b1_2d = b1.reshape(1, I).astype(jnp.float32)

    out = mlp_pallas(x, w1_t_bf, b1_2d, w2_t_bf)
    out = jax.block_until_ready(out)

    ref = mlp_ref(x, w1.T, b1.reshape(1, I), w2.T)
    assert out.shape == (B, D)
    max_err = float(jnp.max(jnp.abs(out - ref)))
    # bf16 GEMM operands vs f32 reference -> ~1e-2 tolerance.
    assert jnp.allclose(out, ref, atol=1e-2, rtol=1e-2), f"mismatch: {max_err}"

    print("KERNEL_OK")
</pallas_src>

<mosaic_0001>
module attributes {stable_mosaic.version = 11 : i64} {
  func.func @mlp_kernel_out_acc(%arg0: i32, %arg1: i32, %arg2: i32, %arg3: memref<152x256xf32, #tpu.memory_space<vmem>>, %arg4: memref<256x512xbf16, #tpu.memory_space<vmem>>, %arg5: memref<1x512xf32, #tpu.memory_space<vmem>>, %arg6: memref<512x256xbf16, #tpu.memory_space<vmem>>, %arg7: memref<152x256xf32, #tpu.memory_space<vmem>>) attributes {dimension_semantics = [#tpu.dimension_semantics<parallel>, #tpu.dimension_semantics<parallel>, #tpu.dimension_semantics<arbitrary>], iteration_bounds = array<i64: 2, 1, 1>, scalar_prefetch = 0 : i64, scratch_operands = 0 : i64, tpu.core_type = #tpu.core_type<tc>, window_params = [{transform_indices = @transform_0, window_bounds = array<i64: 152, 256>}, {transform_indices = @transform_1, window_bounds = array<i64: 256, 512>}, {pipeline_mode = #tpu.pipeline_mode<synchronous>, transform_indices = @transform_2, window_bounds = array<i64: 1, 512>}, {transform_indices = @transform_3, window_bounds = array<i64: 512, 256>}, {transform_indices = @transform_4, window_bounds = array<i64: 152, 256>}]} {
    %c0_i32 = arith.constant 0 : i32
    %0 = arith.cmpi eq, %arg2, %c0_i32 : i32
    %1 = arith.extui %0 : i1 to i32
    %c0_i32_0 = arith.constant 0 : i32
    %2 = arith.cmpi ne, %1, %c0_i32_0 : i32
    scf.if %2 {
      %cst_14 = arith.constant 0.000000e+00 : f32
      %18 = vector.broadcast %cst_14 : f32 to vector<152x256xf32>
      %c0_15 = arith.constant 0 : index
      %c0_16 = arith.constant 0 : index
      %19 = vector.load %arg7[%c0_15, %c0_16] : memref<152x256xf32, #tpu.memory_space<vmem>>, vector<152x256xf32>
      tpu.vector_store %arg7[%c0_15, %c0_16], %18 {strides = array<i32>} : memref<152x256xf32, #tpu.memory_space<vmem>>, vector<152x256xf32>,
    } else {
    }
    %c0 = arith.constant 0 : index
    %c0_1 = arith.constant 0 : index
    %3 = vector.load %arg7[%c0, %c0_1] : memref<152x256xf32, #tpu.memory_space<vmem>>, vector<152x256xf32>
    %c0_2 = arith.constant 0 : index
    %c0_3 = arith.constant 0 : index
    %4 = vector.load %arg3[%c0_2, %c0_3] : memref<152x256xf32, #tpu.memory_space<vmem>>, vector<152x256xf32>
    %5 = arith.truncf %4 : vector<152x256xf32> to vector<152x256xbf16>
    %c0_4 = arith.constant 0 : index
    %c0_5 = arith.constant 0 : index
    %6 = vector.load %arg4[%c0_4, %c0_5] : memref<256x512xbf16, #tpu.memory_space<vmem>>, vector<256x512xbf16>
    %cst = arith.constant dense<0.000000e+00> : vector<152x512xf32>
    %7 = tpu.matmul %5, %6, %cst {dimension_numbers = #tpu.dot_dimension_numbers<[1], [0], [0], [1], [0, 0, 1, 1], [], []>} : vector<152x256xbf16>, vector<256x512xbf16>, vector<152x512xf32> -> vector<152x512xf32>
    %c0_6 = arith.constant 0 : index
    %c0_7 = arith.constant 0 : index
    %8 = vector.load %arg5[%c0_6, %c0_7] : memref<1x512xf32, #tpu.memory_space<vmem>>, vector<1x512xf32>
    %9 = vector.broadcast %8 : vector<1x512xf32> to vector<152x512xf32>
    %10 = arith.addf %7, %9 : vector<152x512xf32>
    %cst_8 = arith.constant 0.000000e+00 : f32
    %11 = vector.broadcast %cst_8 : f32 to vector<152x512xf32>
    %12 = arith.maximumf %10, %11 : vector<152x512xf32>
    %13 = arith.truncf %12 : vector<152x512xf32> to vector<152x512xbf16>
    %c0_9 = arith.constant 0 : index
    %c0_10 = arith.constant 0 : index
    %14 = vector.load %arg6[%c0_9, %c0_10] : memref<512x256xbf16, #tpu.memory_space<vmem>>, vector<512x256xbf16>
    %cst_11 = arith.constant dense<0.000000e+00> : vector<152x256xf32>
    %15 = tpu.matmul %13, %14, %cst_11 {dimension_numbers = #tpu.dot_dimension_numbers<[1], [0], [0], [1], [0, 0, 1, 1], [], []>} : vector<152x512xbf16>, vector<512x256xbf16>, vector<152x256xf32> -> vector<152x256xf32>
    %16 = arith.addf %3, %15 : vector<152x256xf32>
    %c0_12 = arith.constant 0 : index
    %c0_13 = arith.constant 0 : index
    %17 = vector.load %arg7[%c0_12, %c0_13] : memref<152x256xf32, #tpu.memory_space<vmem>>, vector<152x256xf32>
    tpu.vector_store %arg7[%c0_12, %c0_13], %16 {strides = array<i32>} : memref<152x256xf32, #tpu.memory_space<vmem>>, vector<152x256xf32>,
    return
  }
  func.func @transform_0(%arg0: i32, %arg1: i32, %arg2: i32) -> (i32, i32) {
    %c0_i32 = arith.constant 0 : i32
    %c0_i32_0 = arith.constant 0 : i32
    return %arg0, %c0_i32 : i32, i32
  }
  func.func @transform_1(%arg0: i32, %arg1: i32, %arg2: i32) -> (i32, i32) {
    %c0_i32 = arith.constant 0 : i32
    %c0_i32_0 = arith.constant 0 : i32
    return %c0_i32, %arg2 : i32, i32
  }
  func.func @transform_2(%arg0: i32, %arg1: i32, %arg2: i32) -> (i32, i32) {
    %c0_i32 = arith.constant 0 : i32
    %c0_i32_0 = arith.constant 0 : i32
    %c0_i32_1 = arith.constant 0 : i32
    return %c0_i32, %c0_i32_0 : i32, i32
  }
  func.func @transform_3(%arg0: i32, %arg1: i32, %arg2: i32) -> (i32, i32) {
    %c0_i32 = arith.constant 0 : i32
    return %arg2, %arg1 : i32, i32
  }
  func.func @transform_4(%arg0: i32, %arg1: i32, %arg2: i32) -> (i32, i32) {
    %c0_i32 = arith.constant 0 : i32
    return %arg0, %arg1 : i32, i32
  }
}

</mosaic_0001>

<llo_original>
// kernel: tpu_custom_call.1
$region0: #{tpu_custom_call.1}
  #allocation0 [shape = 'u32[]', space=smem, size = 0x4, offset = 0x4, fixed_abs, tag = 'smem constant byte address 0x4 - core index']
  #allocation1 [shape = 'u32[144,128]{1,0:T(1,128)}', space=vmem, size = 0x12000, scoped, tag = 'internal scratch']
  %s0 = inlined_call_operand.hbm [shape: f32[300,256], index: 0, kind: input, shape index: {}]
  %s1 = inlined_call_operand.hbm [shape: bf16[256,512], index: 1, kind: input, shape index: {}]
  %s2 = inlined_call_operand.vmem [shape: f32[1,512], index: 2, kind: input, shape index: {}]
  %s3 = inlined_call_operand.hbm [shape: bf16[512,256], index: 3, kind: input, shape index: {}]
  %s4 = inlined_call_operand.hbm [shape: f32[300,256], index: 4, kind: output, shape index: {}]
  %s5 = sld [smem:[#allocation0]]
  $region65: #{tpu_custom_call.1} parent=0
    _
  %s7 = ssub.s32 1, %s5
  %s8 = scalar_select 0, %s7, %s5
  $region1: #{tpu_custom_call.1} parent=0
    #allocation2 [shape = 'u8[311296]{0}', space=vmem, size = 0x4c000, scoped, tag = 'input window, operand 0']
    #allocation3 [shape = 's32[2]{0}', space=sflag, size = 0x8, scoped, tag = 'scoped memory for tpu_custom_call.1']
    #allocation4 [shape = 's32[2]{0}', space=sflag, size = 0x8, scoped, tag = 'scoped memory for tpu_custom_call.1']
    #allocation5 [shape = 'u8[262144]{0}', space=vmem, size = 0x40000, scoped, tag = 'input window, operand 1, single buffered']
    #allocation6 [shape = 's32[1]{0}', space=sflag, size = 0x4, scoped, tag = 'scoped memory for tpu_custom_call.1']
    #allocation7 [shape = 'u8[262144]{0}', space=vmem, size = 0x40000, scoped, tag = 'input window, operand 3, single buffered']
    #allocation8 [shape = 'u8[311296]{0}', space=vmem, size = 0x4c000, scoped, tag = 'output window, operand 0']
    %9 = vsyncpa [#allocation3], 0
    %s10 = scalar_lea.sflag [#allocation3], 1
    %11 = vsyncpa %s10, 0
    %12 = vsyncpa [#allocation6], 0
    %13 = vsyncpa [#allocation4], 0
    %s14 = scalar_lea.sflag [#allocation4], 1
    %15 = vsyncpa %s14, 0
    loop: start=0, step=1, limit=4
    $region2: #{tpu_custom_call.1} parent=1 // loop_pre_header
      _
    $region3: #{tpu_custom_call.1} parent=1 // loop_header
      %s17 = sphi 0, %s21
      %p18 = scmp.ge.s32.totalorder %s17, 4
      %s24 = sphi 0, %s43
      %s25 = sphi 0, %s39
      %s26 = sphi 0, %s35
      %s27 = sphi 0, %s24
      %s28 = sphi 0, %s25
      %s29 = sphi 0, %s26
      %s30 = sphi 0, %s27
      %s31 = sphi 0, %s28
      %s32 = sphi 0, %s29
      %s46 = sphi 0, %s48
      %s49 = sphi 0, %s46
      %s50 = sphi 0, %s49
      %s66 = sphi 0, %s50
      %s72 = sphi 0, %s74
      %s75 = sphi 0, %s72
      %s76 = sphi 0, %s75
      %s92 = sphi 0, %s76
      %s96 = sphi 0, %s96
      %s98 = sphi 0, %s96
      %s99 = sphi 0, %s98
      %s113 = sphi 0, %s99
      %s121 = sphi 0, %s123
      %s124 = sphi 0, %s121
      %s125 = sphi 0, %s124
      %s141 = sphi 0, %s125
      %s149 = sphi 0, %s151
      %s152 = sphi 0, %s149
      %s153 = sphi 0, %s152
      %s169 = sphi 0, %s153
    $region4: #{tpu_custom_call.1} parent=1 // loop_header_branch
      %20 = sbr.rel (%p18) target = $region8
    $region5: #{tpu_custom_call.1} parent=1 // loop_body
      %s22 = ssub.s32 %s17, 1
      %s23 = ssub.s32 %s17, 2
      %s33 = sadd.s32 1, %s26
      %p34 = scmp.ge.s32.totalorder %s33, 1
      %s35 = scalar_select %p34, 0, %s33
      %s36 = sadd.s32 1, %s25
      %s37 = scalar_select %p34, %s36, %s25
      %p38 = scmp.ge.s32.totalorder %s37, 1
      %s39 = scalar_select %p38, 0, %s37
      %s40 = sadd.s32 1, %s24
      %s41 = scalar_select %p38, %s40, %s24
      %p42 = scmp.ge.s32.totalorder %s41, 2
      %s43 = scalar_select %p42, 0, %s41
      %s44 = ssub.s32 %s24, %s43
      %p45 = scmp.eq.s32.totalorder %s44, 0
      %s47 = sadd.s32 %s46, 1
      %s48 = scalar_select %p45, %s46, %s47
      %p51 = pneg %p45
      %p52 = scmp.eq.s32.totalorder %s17, 1
      %p53 = por %p51, %p52
      %p54 = scmp.ne.s32.totalorder %s46, %s49
      %p55 = scmp.eq.s32.totalorder %s17, 0
      %p56 = por %p54, %p55
      %p57 = scmp.ne.s32.totalorder %s46, %s49
      %p58 = scmp.eq.s32.totalorder %s22, 1
      %p59 = por %p57, %p58
      %p60 = scmp.ne.s32.totalorder %s49, %s50
      %p61 = scmp.eq.s32.totalorder %s22, 0
      %p62 = por %p60, %p61
      %p63 = scmp.ne.s32.totalorder %s49, %s50
      %p64 = scmp.eq.s32.totalorder %s23, 1
      %p65 = por %p63, %p64
      %p67 = scmp.ne.s32.totalorder %s50, %s66
      %p68 = scmp.eq.s32.totalorder %s23, 0
      %p69 = por %p67, %p68
      %s70 = ssub.s32 %s26, %s35
      %p71 = scmp.eq.s32.totalorder %s70, 0
      %s73 = sadd.s32 %s72, 1
      %s74 = scalar_select %p71, %s72, %s73
      %p77 = pneg %p71
      %p78 = scmp.eq.s32.totalorder %s17, 1
      %p79 = por %p77, %p78
      %p80 = scmp.ne.s32.totalorder %s72, %s75
      %p81 = scmp.eq.s32.totalorder %s17, 0
      %p82 = por %p80, %p81
      %p83 = scmp.ne.s32.totalorder %s72, %s75
      %p84 = scmp.eq.s32.totalorder %s22, 1
      %p85 = por %p83, %p84
      %p86 = scmp.ne.s32.totalorder %s75, %s76
      %p87 = scmp.eq.s32.totalorder %s22, 0
      %p88 = por %p86, %p87
      %p89 = scmp.ne.s32.totalorder %s75, %s76
      %p90 = scmp.eq.s32.totalorder %s23, 1
      %p91 = por %p89, %p90
      %p93 = scmp.ne.s32.totalorder %s76, %s92
      %p94 = scmp.eq.s32.totalorder %s23, 0
      %p95 = por %p93, %p94
      %s97 = sadd.s32 %s96, 1
      %p100 = scmp.eq.s32.totalorder %s17, 1
      %p101 = scmp.ne.s32.totalorder %s96, %s98
      %p102 = scmp.eq.s32.totalorder %s17, 0
      %p103 = por %p101, %p102
      %p104 = scmp.ne.s32.totalorder %s96, %s98
      %p105 = scmp.eq.s32.totalorder %s22, 1
      %p106 = por %p104, %p105
      %p107 = scmp.ne.s32.totalorder %s98, %s99
      %p108 = scmp.eq.s32.totalorder %s22, 0
      %p109 = por %p107, %p108
      %p110 = scmp.ne.s32.totalorder %s98, %s99
      %p111 = scmp.eq.s32.totalorder %s23, 1
      %p112 = por %p110, %p111
      %p114 = scmp.ne.s32.totalorder %s99, %s113
      %p115 = scmp.eq.s32.totalorder %s23, 0
      %p116 = por %p114, %p115
      %s117 = ssub.s32 %s26, %s35
      %s118 = ssub.s32 %s25, %s39
      %s119 = sor.u32 %s117, %s118
      %p120 = scmp.eq.s32.totalorder %s119, 0
      %s122 = sadd.s32 %s121, 1
      %s123 = scalar_select %p120, %s121, %s122
      %p126 = pneg %p120
      %p127 = scmp.eq.s32.totalorder %s17, 1
      %p128 = por %p126, %p127
      %p129 = scmp.ne.s32.totalorder %s121, %s124
      %p130 = scmp.eq.s32.totalorder %s17, 0
      %p131 = por %p129, %p130
      %p132 = scmp.ne.s32.totalorder %s121, %s124
      %p133 = scmp.eq.s32.totalorder %s22, 1
      %p134 = por %p132, %p133
      %p135 = scmp.ne.s32.totalorder %s124, %s125
      %p136 = scmp.eq.s32.totalorder %s22, 0
      %p137 = por %p135, %p136
      %p138 = scmp.ne.s32.totalorder %s124, %s125
      %p139 = scmp.eq.s32.totalorder %s23, 1
      %p140 = por %p138, %p139
      %p142 = scmp.ne.s32.totalorder %s125, %s141
      %p143 = scmp.eq.s32.totalorder %s23, 0
      %p144 = por %p142, %p143
      %s145 = ssub.s32 %s24, %s43
      %s146 = ssub.s32 %s25, %s39
      %s147 = sor.u32 %s145, %s146
      %p148 = scmp.eq.s32.totalorder %s147, 0
      %s150 = sadd.s32 %s149, 1
      %s151 = scalar_select %p148, %s149, %s150
      %p154 = pneg %p148
      %p155 = scmp.eq.s32.totalorder %s17, 1
      %p156 = por %p154, %p155
      %p157 = scmp.ne.s32.totalorder %s149, %s152
      %p158 = scmp.eq.s32.totalorder %s17, 0
      %p159 = por %p157, %p158
      %p160 = scmp.ne.s32.totalorder %s149, %s152
      %p161 = scmp.eq.s32.totalorder %s22, 1
      %p162 = por %p160, %p161
      %p163 = scmp.ne.s32.totalorder %s152, %s153
      %p164 = scmp.eq.s32.totalorder %s22, 0
      %p165 = por %p163, %p164
      %p166 = scmp.ne.s32.totalorder %s152, %s153
      %p167 = scmp.eq.s32.totalorder %s23, 1
      %p168 = por %p166, %p167
      %p170 = scmp.ne.s32.totalorder %s153, %s169
      %p171 = scmp.eq.s32.totalorder %s23, 0
      %p172 = por %p170, %p171
      %p173 = scmp.le.s32.totalorder 1, %s17
      %p174 = scmp.lt.s32.totalorder %s17, 3
      %p175 = pnand %p173, %p174
      %p176 = pneg %p175
      // Predicated region
      $region9: #{tpu_custom_call.1} parent=5 // pred_check
        _
      $region10: #{tpu_custom_call.1} parent=5 // pred_check_branch
        %178 = sbr.rel (%p175) target = $region12
      $region11: #{tpu_custom_call.1} parent=5 // pred_region
        %s179 = ssub.s32 %s17, 1
        // Predicated region
        $region13: #{tpu_custom_call.1} parent=11 // pred_check
          %p180 = pneg %p88
        $region14: #{tpu_custom_call.1} parent=11 // pred_check_branch
          %182 = sbr.rel (%p180) target = $region16
        $region15: #{tpu_custom_call.1} parent=11 // pred_region
          %s183 = smul.u32 4, %s29
          %s185 = ssub.s32 8192, 8192
          %186 = vsyncadd [#allocation6], %s185
          %s187 = smul.addr %s183, 64
          %s188 = scalar_lea.hbm %s1, %s187
          %s189 = sshll.u32 [#allocation5], 4
          %s190 = int_to_ptr.vmem [resolvable:$true] %s189
          %195 = dma.hbm_to_vmem [thread:$0]  %s188, 8192, %s190, [#allocation6], 256, 256, 16
        $region16: #{tpu_custom_call.1} parent=11 // pred_fallthru
          _
        // Predicated region
        $region17: #{tpu_custom_call.1} parent=11 // pred_check
          %p196 = pneg %p109
        $region18: #{tpu_custom_call.1} parent=11 // pred_check_branch
          %198 = sbr.rel (%p196) target = $region20
        $region19: #{tpu_custom_call.1} parent=11 // pred_region
          _
        $region20: #{tpu_custom_call.1} parent=11 // pred_fallthru
          _
        // Predicated region
        $region21: #{tpu_custom_call.1} parent=11 // pred_check
          %p199 = pneg %p137
        $region22: #{tpu_custom_call.1} parent=11 // pred_check_branch
          %201 = sbr.rel (%p199) target = $region24
        $region23: #{tpu_custom_call.1} parent=11 // pred_region
          %s202 = smul.u32 64, %s29
          %s203 = smul.u32 2, %s28
          %s205 = ssub.s32 8192, 8192
          %206 = vsyncadd [#allocation6], %s205
          %s207 = smul.addr %s202, 2
          %s208 = sadd.s32 %s203, %s207
          %s209 = smul.addr %s208, 64
          %s210 = scalar_lea.hbm %s3, %s209
          %s211 = sshll.u32 [#allocation7], 4
          %s212 = int_to_ptr.vmem [resolvable:$true] %s211
          %217 = dma.hbm_to_vmem [thread:$0]  %s210, 8192, %s212, [#allocation6], 128, 128, 8
        $region24: #{tpu_custom_call.1} parent=11 // pred_fallthru
          _
      $region12: #{tpu_custom_call.1} parent=5 // pred_fallthru
        _
      %p218 = scmp.lt.s32.totalorder %s17, 2
      // Predicated region
      $region25: #{tpu_custom_call.1} parent=5 // pred_check
        %p219 = pneg %p218
      $region26: #{tpu_custom_call.1} parent=5 // pred_check_branch
        %221 = sbr.rel (%p219) target = $region28
      $region27: #{tpu_custom_call.1} parent=5 // pred_region
        // Predicated region
        $region29: #{tpu_custom_call.1} parent=27 // pred_check
          %p222 = pneg %p56
        $region30: #{tpu_custom_call.1} parent=27 // pred_check_branch
          %224 = sbr.rel (%p222) target = $region32
        $region31: #{tpu_custom_call.1} parent=27 // pred_region
          %s225 = sand.u32 %s46, 1
          %s226 = scalar_lea.sflag [#allocation3], %s225
          %s227 = sand.u32 %s46, 1
          %s228 = smul.addr %s227, 304
          %s229 = scalar_lea.vmem [#allocation2], %s228
          %s230 = smul.u32 19, %s24
          %s232 = ssub.s32 4864, 4864
          %233 = vsyncadd %s226, %s232
          %s234 = smul.addr %s230, 2
          %s235 = smul.addr %s234, 128
          %s236 = scalar_lea.hbm %s0, %s235
          %s237 = sshll.u32 %s229, 4
          %s238 = int_to_ptr.vmem [resolvable:$true] %s237
          %243 = dma.hbm_to_vmem [thread:$0]  %s236, 4864, %s238, %s226, 256, 256, 16
        $region32: #{tpu_custom_call.1} parent=27 // pred_fallthru
          _
      $region28: #{tpu_custom_call.1} parent=5 // pred_fallthru
        _
      %p244 = scmp.le.s32.totalorder 1, %s17
      %p245 = scmp.lt.s32.totalorder %s17, 3
      %p246 = pnand %p244, %p245
      %p247 = pneg %p246
      // Predicated region
      $region33: #{tpu_custom_call.1} parent=5 // pred_check
        _
      $region34: #{tpu_custom_call.1} parent=5 // pred_check_branch
        %249 = sbr.rel (%p246) target = $region36
      $region35: #{tpu_custom_call.1} parent=5 // pred_region
        %s250 = ssub.s32 %s17, 1
        %s251 = sand.u32 %s49, 1
        %s252 = scalar_lea.sflag [#allocation3], %s251
        %s253 = sand.u32 %s49, 1
        %s254 = smul.addr %s253, 304
        %s255 = scalar_lea.vmem [#allocation2], %s254
        // Predicated region
        $region37: #{tpu_custom_call.1} parent=35 // pred_check
          %p256 = pneg %p62
        $region38: #{tpu_custom_call.1} parent=35 // pred_check_branch
          %258 = sbr.rel (%p256) target = $region40
        $region39: #{tpu_custom_call.1} parent=35 // pred_region
          %259 = dma.done %s252, 4864
        $region40: #{tpu_custom_call.1} parent=35 // pred_fallthru
          _
        // Predicated region
        $region41: #{tpu_custom_call.1} parent=35 // pred_check
          %p260 = pneg %p88
        $region42: #{tpu_custom_call.1} parent=35 // pred_check_branch
          %262 = sbr.rel (%p260) target = $region44
        $region43: #{tpu_custom_call.1} parent=35 // pred_region
          %263 = dma.done [#allocation6], 8192
        $region44: #{tpu_custom_call.1} parent=35 // pred_fallthru
          _
        // Predicated region
        $region45: #{tpu_custom_call.1} parent=35 // pred_check
          %p264 = pneg %p137
        $region46: #{tpu_custom_call.1} parent=35 // pred_check_branch
          %266 = sbr.rel (%p264) target = $region48
        $region47: #{tpu_custom_call.1} parent=35 // pred_region
          %267 = dma.done [#allocation6], 8192
        $region48: #{tpu_custom_call.1} parent=35 // pred_fallthru
          _
        %s268 = sand.u32 %s49, 1
        %s269 = scalar_lea.sflag [#allocation3], %s268
        %s270 = sand.u32 %s49, 1
        %s271 = smul.addr %s270, 304
        %s272 = scalar_lea.vmem [#allocation2], %s271
        %p273 = pneg %p62
        %p274 = pneg %p59
        %p275 = pneg %p88
        %p276 = pneg %p85
        %p277 = pneg %p109
        %p278 = pneg %p106
        %p279 = pneg %p137
        %p280 = pneg %p134
        %p281 = pneg %p165
        %p282 = pneg %p162
        %s283 = sand.u32 %s152, 1
        %s284 = scalar_lea.sflag [#allocation4], %s283
        %s285 = sand.u32 %s152, 1
        %s286 = smul.addr %s285, 304
        %s287 = scalar_lea.vmem [#allocation8], %s286
        %s288 = smul.u32 19, %s27
        %s289 = smul.u32 4, %s29
        %s290 = smul.u32 64, %s29
        %s291 = smul.u32 2, %s28
        %s292 = smul.u32 19, %s27
        %s293 = smul.u32 2, %s28
        %p294 = scmp.eq.s32.totalorder %s29, 0
        // Predicated region
        $region49: #{tpu_custom_call.1} parent=35 // pred_check
          %p295 = pneg %p294
        $region50: #{tpu_custom_call.1} parent=35 // pred_check_branch
          %297 = sbr.rel (%p295) target = $region52
        $region51: #{tpu_custom_call.1} parent=35 // pred_region
          %298 = vst [vmem:[%s287] sm:$0xff] 0.0
          %299 = vst [vmem:[%s287 + $0x8] sm:$0xff] 0.0
          %300 = vst [vmem:[%s287 + $0x10] sm:$0xff] 0.0
          %301 = vst [vmem:[%s287 + $0x18] sm:$0xff] 0.0
          %302 = vst [vmem:[%s287 + $0x20] sm:$0xff] 0.0
          %303 = vst [vmem:[%s287 + $0x28] sm:$0xff] 0.0
          %304 = vst [vmem:[%s287 + $0x30] sm:$0xff] 0.0
          %305 = vst [vmem:[%s287 + $0x38] sm:$0xff] 0.0
          %306 = vst [vmem:[%s287 + $0x40] sm:$0xff] 0.0
          %307 = vst [vmem:[%s287 + $0x48] sm:$0xff] 0.0
          %308 = vst [vmem:[%s287 + $0x50] sm:$0xff] 0.0
          %309 = vst [vmem:[%s287 + $0x58] sm:$0xff] 0.0
          %310 = vst [vmem:[%s287 + $0x60] sm:$0xff] 0.0
          %311 = vst [vmem:[%s287 + $0x68] sm:$0xff] 0.0
          %312 = vst [vmem:[%s287 + $0x70] sm:$0xff] 0.0
          %313 = vst [vmem:[%s287 + $0x78] sm:$0xff] 0.0
          %314 = vst [vmem:[%s287 + $0x80] sm:$0xff] 0.0
          %315 = vst [vmem:[%s287 + $0x88] sm:$0xff] 0.0
          %316 = vst [vmem:[%s287 + $0x90] sm:$0xff] 0.0
          %317 = vst [vmem:[%s287 + $0x98] sm:$0xff] 0.0
          %318 = vst [vmem:[%s287 + $0xa0] sm:$0xff] 0.0
          %319 = vst [vmem:[%s287 + $0xa8] sm:$0xff] 0.0
          %320 = vst [vmem:[%s287 + $0xb0] sm:$0xff] 0.0
          %321 = vst [vmem:[%s287 + $0xb8] sm:$0xff] 0.0
          %322 = vst [vmem:[%s287 + $0xc0] sm:$0xff] 0.0
          %323 = vst [vmem:[%s287 + $0xc8] sm:$0xff] 0.0
          %324 = vst [vmem:[%s287 + $0xd0] sm:$0xff] 0.0
          %325 = vst [vmem:[%s287 + $0xd8] sm:$0xff] 0.0
          %326 = vst [vmem:[%s287 + $0xe0] sm:$0xff] 0.0
          %327 = vst [vmem:[%s287 + $0xe8] sm:$0xff] 0.0
          %328 = vst [vmem:[%s287 + $0xf0] sm:$0xff] 0.0
          %329 = vst [vmem:[%s287 + $0xf8] sm:$0xff] 0.0
          %330 = vst [vmem:[%s287 + $0x100] sm:$0xff] 0.0
          %331 = vst [vmem:[%s287 + $0x108] sm:$0xff] 0.0
          %332 = vst [vmem:[%s287 + $0x110] sm:$0xff] 0.0
          %333 = vst [vmem:[%s287 + $0x118] sm:$0xff] 0.0
          %334 = vst [vmem:[%s287 + $0x120] sm:$0xff] 0.0
          %335 = vst [vmem:[%s287 + $0x128] sm:$0xff] 0.0
        $region52: #{tpu_custom_call.1} parent=35 // pred_fallthru
          _
        %v336 = vld [vmem:[%s287] sm:$0xff]
        %v337 = vld [vmem:[%s287 + $0x8] sm:$0xff]
        %v338 = vld [vmem:[%s287 + $0x10] sm:$0xff]
        %v339 = vld [vmem:[%s287 + $0x18] sm:$0xff]
        %v340 = vld [vmem:[%s287 + $0x20] sm:$0xff]
        %v341 = vld [vmem:[%s287 + $0x28] sm:$0xff]
        %v342 = vld [vmem:[%s287 + $0x30] sm:$0xff]
        %v343 = vld [vmem:[%s287 + $0x38] sm:$0xff]
        %v344 = vld [vmem:[%s287 + $0x40] sm:$0xff]
        %v345 = vld [vmem:[%s287 + $0x48] sm:$0xff]
        %v346 = vld [vmem:[%s287 + $0x50] sm:$0xff]
        %v347 = vld [vmem:[%s287 + $0x58] sm:$0xff]
        %v348 = vld [vmem:[%s287 + $0x60] sm:$0xff]
        %v349 = vld [vmem:[%s287 + $0x68] sm:$0xff]
        %v350 = vld [vmem:[%s287 + $0x70] sm:$0xff]
        %v351 = vld [vmem:[%s287 + $0x78] sm:$0xff]
        %v352 = vld [vmem:[%s287 + $0x80] sm:$0xff]
        %v353 = vld [vmem:[%s287 + $0x88] sm:$0xff]
        %v354 = vld [vmem:[%s287 + $0x90] sm:$0xff]
        %v355 = vld [vmem:[%s287 + $0x98] sm:$0xff]
        %v356 = vld [vmem:[%s287 + $0xa0] sm:$0xff]
        %v357 = vld [vmem:[%s287 + $0xa8] sm:$0xff]
        %v358 = vld [vmem:[%s287 + $0xb0] sm:$0xff]
        %v359 = vld [vmem:[%s287 + $0xb8] sm:$0xff]
        %v360 = vld [vmem:[%s287 + $0xc0] sm:$0xff]
        %v361 = vld [vmem:[%s287 + $0xc8] sm:$0xff]
        %v362 = vld [vmem:[%s287 + $0xd0] sm:$0xff]
        %v363 = vld [vmem:[%s287 + $0xd8] sm:$0xff]
        %v364 = vld [vmem:[%s287 + $0xe0] sm:$0xff]
        %v365 = vld [vmem:[%s287 + $0xe8] sm:$0xff]
        %v366 = vld [vmem:[%s287 + $0xf0] sm:$0xff]
        %v367 = vld [vmem:[%s287 + $0xf8] sm:$0xff]
        %v368 = vld [vmem:[%s287 + $0x100] sm:$0xff]
        %v369 = vld [vmem:[%s287 + $0x108] sm:$0xff]
        %v370 = vld [vmem:[%s287 + $0x110] sm:$0xff]
        %v371 = vld [vmem:[%s287 + $0x118] sm:$0xff]
        %v372 = vld [vmem:[%s287 + $0x120] sm:$0xff]
        %v373 = vld [vmem:[%s287 + $0x128] sm:$0xff]
        %v374 = vld [vmem:[%s255] sm:$0xff]
        %v375 = vld [vmem:[%s255 + $0x8] sm:$0xff]
        %v376 = vld [vmem:[%s255 + $0x10] sm:$0xff]
        %v377 = vld [vmem:[%s255 + $0x18] sm:$0xff]
        %v378 = vld [vmem:[%s255 + $0x20] sm:$0xff]
        %v379 = vld [vmem:[%s255 + $0x28] sm:$0xff]
        %v380 = vld [vmem:[%s255 + $0x30] sm:$0xff]
        %v381 = vld [vmem:[%s255 + $0x38] sm:$0xff]
        %v382 = vld [vmem:[%s255 + $0x40] sm:$0xff]
        %v383 = vld [vmem:[%s255 + $0x48] sm:$0xff]
        %v384 = vld [vmem:[%s255 + $0x50] sm:$0xff]
        %v385 = vld [vmem:[%s255 + $0x58] sm:$0xff]
        %v386 = vld [vmem:[%s255 + $0x60] sm:$0xff]
        %v387 = vld [vmem:[%s255 + $0x68] sm:$0xff]
        %v388 = vld [vmem:[%s255 + $0x70] sm:$0xff]
        %v389 = vld [vmem:[%s255 + $0x78] sm:$0xff]
        %v390 = vld [vmem:[%s255 + $0x80] sm:$0xff]
        %v391 = vld [vmem:[%s255 + $0x88] sm:$0xff]
        %v392 = vld [vmem:[%s255 + $0x90] sm:$0xff]
        %v393 = vld [vmem:[%s255 + $0x98] sm:$0xff]
        %v394 = vld [vmem:[%s255 + $0xa0] sm:$0xff]
        %v395 = vld [vmem:[%s255 + $0xa8] sm:$0xff]
        %v396 = vld [vmem:[%s255 + $0xb0] sm:$0xff]
        %v397 = vld [vmem:[%s255 + $0xb8] sm:$0xff]
        %v398 = vld [vmem:[%s255 + $0xc0] sm:$0xff]
        %v399 = vld [vmem:[%s255 + $0xc8] sm:$0xff]
        %v400 = vld [vmem:[%s255 + $0xd0] sm:$0xff]
        %v401 = vld [vmem:[%s255 + $0xd8] sm:$0xff]
        %v402 = vld [vmem:[%s255 + $0xe0] sm:$0xff]
        %v403 = vld [vmem:[%s255 + $0xe8] sm:$0xff]
        %v404 = vld [vmem:[%s255 + $0xf0] sm:$0xff]
        %v405 = vld [vmem:[%s255 + $0xf8] sm:$0xff]
        %v406 = vld [vmem:[%s255 + $0x100] sm:$0xff]
        %v407 = vld [vmem:[%s255 + $0x108] sm:$0xff]
        %v408 = vld [vmem:[%s255 + $0x110] sm:$0xff]
        %v409 = vld [vmem:[%s255 + $0x118] sm:$0xff]
        %v410 = vld [vmem:[%s255 + $0x120] sm:$0xff]
        %v411 = vld [vmem:[%s255 + $0x128] sm:$0xff]
        %v412 = vpack.c.bf16 %v376, %v374
        %v413 = vpack.c.bf16 %v377, %v375
        %v414 = vpack.c.bf16 %v380, %v378
        %v415 = vpack.c.bf16 %v381, %v379
        %v416 = vpack.c.bf16 %v384, %v382
        %v417 = vpack.c.bf16 %v385, %v383
        %v418 = vpack.c.bf16 %v388, %v386
        %v419 = vpack.c.bf16 %v389, %v387
        %v420 = vpack.c.bf16 %v392, %v390
        %v421 = vpack.c.bf16 %v393, %v391
        %v422 = vpack.c.bf16 %v396, %v394
        %v423 = vpack.c.bf16 %v397, %v395
        %v424 = vpack.c.bf16 %v400, %v398
        %v425 = vpack.c.bf16 %v401, %v399
        %v426 = vpack.c.bf16 %v404, %v402
        %v427 = vpack.c.bf16 %v405, %v403
        %v428 = vpack.c.bf16 %v408, %v406
        %v429 = vpack.c.bf16 %v409, %v407
        %v430 = vpack.c.bf16 %v410, %v410
        %v431 = vpack.c.bf16 %v411, %v411
        %v432 = vld [vmem:[#allocation5] sm:$0xff]
        %v433 = vld [vmem:[#allocation5 + $0x8] sm:$0xff]
        %v434 = vld [vmem:[#allocation5 + $0x10] sm:$0xff]
        %v435 = vld [vmem:[#allocation5 + $0x18] sm:$0xff]
        %v436 = vld [vmem:[#allocation5 + $0x20] sm:$0xff]
        %v437 = vld [vmem:[#allocation5 + $0x28] sm:$0xff]
        %v438 = vld [vmem:[#allocation5 + $0x30] sm:$0xff]
        %v439 = vld [vmem:[#allocation5 + $0x38] sm:$0xff]
        %v440 = vld [vmem:[#allocation5 + $0x40] sm:$0xff]
        %v441 = vld [vmem:[#allocation5 + $0x48] sm:$0xff]
        %v442 = vld [vmem:[#allocation5 + $0x50] sm:$0xff]
        %v443 = vld [vmem:[#allocation5 + $0x58] sm:$0xff]
        %v444 = vld [vmem:[#allocation5 + $0x60] sm:$0xff]
        %v445 = vld [vmem:[#allocation5 + $0x68] sm:$0xff]
        %v446 = vld [vmem:[#allocation5 + $0x70] sm:$0xff]
        %v447 = vld [vmem:[#allocation5 + $0x78] sm:$0xff]
        %v448 = vld [vmem:[#allocation5 + $0x80] sm:$0xff]
        %v449 = vld [vmem:[#allocation5 + $0x88] sm:$0xff]
        %v450 = vld [vmem:[#allocation5 + $0x90] sm:$0xff]
        %v451 = vld [vmem:[#allocation5 + $0x98] sm:$0xff]
        %v452 = vld [vmem:[#allocation5 + $0xa0] sm:$0xff]
        %v453 = vld [vmem:[#allocation5 + $0xa8] sm:$0xff]
        %v454 = vld [vmem:[#allocation5 + $0xb0] sm:$0xff]
        %v455 = vld [vmem:[#allocation5 + $0xb8] sm:$0xff]
        %v456 = vld [vmem:[#allocation5 + $0xc0] sm:$0xff]
        %v457 = vld [vmem:[#allocation5 + $0xc8] sm:$0xff]
        %v458 = vld [vmem:[#allocation5 + $0xd0] sm:$0xff]
        %v459 = vld [vmem:[#allocation5 + $0xd8] sm:$0xff]
        %v460 = vld [vmem:[#allocation5 + $0xe0] sm:$0xff]
        %v461 = vld [vmem:[#allocation5 + $0xe8] sm:$0xff]
        %v462 = vld [vmem:[#allocation5 + $0xf0] sm:$0xff]
        %v463 = vld [vmem:[#allocation5 + $0xf8] sm:$0xff]
        %v464 = vld [vmem:[#allocation5 + $0x100] sm:$0xff]
        %v465 = vld [vmem:[#allocation5 + $0x108] sm:$0xff]
        %v466 = vld [vmem:[#allocation5 + $0x110] sm:$0xff]
        %v467 = vld [vmem:[#allocation5 + $0x118] sm:$0xff]
        %v468 = vld [vmem:[#allocation5 + $0x120] sm:$0xff]
        %v469 = vld [vmem:[#allocation5 + $0x128] sm:$0xff]
        %v470 = vld [vmem:[#allocation5 + $0x130] sm:$0xff]
        %v471 = vld [vmem:[#allocation5 + $0x138] sm:$0xff]
        %v472 = vld [vmem:[#allocation5 + $0x140] sm:$0xff]
        %v473 = vld [vmem:[#allocation5 + $0x148] sm:$0xff]
        %v474 = vld [vmem:[#allocation5 + $0x150] sm:$0xff]
        %v475 = vld [vmem:[#allocation5 + $0x158] sm:$0xff]
        %v476 = vld [vmem:[#allocation5 + $0x160] sm:$0xff]
        %v477 = vld [vmem:[#allocation5 + $0x168] sm:$0xff]
        %v478 = vld [vmem:[#allocation5 + $0x170] sm:$0xff]
        %v479 = vld [vmem:[#allocation5 + $0x178] sm:$0xff]
        %v480 = vld [vmem:[#allocation5 + $0x180] sm:$0xff]
        %v481 = vld [vmem:[#allocation5 + $0x188] sm:$0xff]
        %v482 = vld [vmem:[#allocation5 + $0x190] sm:$0xff]
        %v483 = vld [vmem:[#allocation5 + $0x198] sm:$0xff]
        %v484 = vld [vmem:[#allocation5 + $0x1a0] sm:$0xff]
        %v485 = vld [vmem:[#allocation5 + $0x1a8] sm:$0xff]
        %v486 = vld [vmem:[#allocation5 + $0x1b0] sm:$0xff]
        %v487 = vld [vmem:[#allocation5 + $0x1b8] sm:$0xff]
        %v488 = vld [vmem:[#allocation5 + $0x1c0] sm:$0xff]
        %v489 = vld [vmem:[#allocation5 + $0x1c8] sm:$0xff]
        %v490 = vld [vmem:[#allocation5 + $0x1d0] sm:$0xff]
        %v491 = vld [vmem:[#allocation5 + $0x1d8] sm:$0xff]
        %v492 = vld [vmem:[#allocation5 + $0x1e0] sm:$0xff]
        %v493 = vld [vmem:[#allocation5 + $0x1e8] sm:$0xff]
        %v494 = vld [vmem:[#allocation5 + $0x1f0] sm:$0xff]
        %v495 = vld [vmem:[#allocation5 + $0x1f8] sm:$0xff]
        %v496 = vld [vmem:[%s2] sm:$0xf]
        %v498 = vlaneseq
        %v499 = vshrl.u32 %v498, 7
        %v500 = vsub.s32 0, %v499
        %v501 = vrot.slane %v496, %v500
        %v502 = vlaneseq
        %v503 = vshrl.u32 %v502, 7
        %v504 = vsub.s32 1, %v503
        %v505 = vrot.slane %v496, %v504
        %v506 = vlaneseq
        %v507 = vshrl.u32 %v506, 7
        %v508 = vsub.s32 2, %v507
        %v509 = vrot.slane %v496, %v508
        %v510 = vlaneseq
        %v511 = vshrl.u32 %v510, 7
        %v512 = vsub.s32 3, %v511
        %v513 = vrot.slane %v496, %v512
        %v582 = vunpack.c.l.b16 %v432
        %v583 = vunpack.c.h.b16 %v432
        %v584 = vunpack.c.l.b16 %v433
        %v585 = vunpack.c.h.b16 %v433
        %v586 = vunpack.c.l.b16 %v434
        %v587 = vunpack.c.h.b16 %v434
        %v588 = vunpack.c.l.b16 %v435
        %v589 = vunpack.c.h.b16 %v435
        %v590 = vunpack.c.l.b16 %v436
        %v591 = vunpack.c.h.b16 %v436
        %v592 = vunpack.c.l.b16 %v437
        %v593 = vunpack.c.h.b16 %v437
        %v594 = vunpack.c.l.b16 %v438
        %v595 = vunpack.c.h.b16 %v438
        %v596 = vunpack.c.l.b16 %v439
        %v597 = vunpack.c.h.b16 %v439
        %v598 = vunpack.c.l.b16 %v440
        %v599 = vunpack.c.h.b16 %v440
        %v600 = vunpack.c.l.b16 %v441
        %v601 = vunpack.c.h.b16 %v441
        %v602 = vunpack.c.l.b16 %v442
        %v603 = vunpack.c.h.b16 %v442
        %v604 = vunpack.c.l.b16 %v443
        %v605 = vunpack.c.h.b16 %v443
        %v606 = vunpack.c.l.b16 %v444
        %v607 = vunpack.c.h.b16 %v444
        %v608 = vunpack.c.l.b16 %v445
        %v609 = vunpack.c.h.b16 %v445
        %v610 = vunpack.c.l.b16 %v446
        %v611 = vunpack.c.h.b16 %v446
        %v612 = vunpack.c.l.b16 %v447
        %v613 = vunpack.c.h.b16 %v447
        %v614 = vunpack.c.l.b16 %v448
        %v615 = vunpack.c.h.b16 %v448
        %v616 = vunpack.c.l.b16 %v449
        %v617 = vunpack.c.h.b16 %v449
        %v618 = vunpack.c.l.b16 %v450
        %v619 = vunpack.c.h.b16 %v450
        %v620 = vunpack.c.l.b16 %v451
        %v621 = vunpack.c.h.b16 %v451
        %v622 = vunpack.c.l.b16 %v452
        %v623 = vunpack.c.h.b16 %v452
        %v624 = vunpack.c.l.b16 %v453
        %v625 = vunpack.c.h.b16 %v453
        %v626 = vunpack.c.l.b16 %v454
        %v627 = vunpack.c.h.b16 %v454
        %v628 = vunpack.c.l.b16 %v455
        %v629 = vunpack.c.h.b16 %v455
        %v630 = vunpack.c.l.b16 %v456
        %v631 = vunpack.c.h.b16 %v456
        %v632 = vunpack.c.l.b16 %v457
        %v633 = vunpack.c.h.b16 %v457
        %v634 = vunpack.c.l.b16 %v458
        %v635 = vunpack.c.h.b16 %v458
        %v636 = vunpack.c.l.b16 %v459
        %v637 = vunpack.c.h.b16 %v459
        %v638 = vunpack.c.l.b16 %v460
        %v639 = vunpack.c.h.b16 %v460
        %v640 = vunpack.c.l.b16 %v461
        %v641 = vunpack.c.h.b16 %v461
        %v642 = vunpack.c.l.b16 %v462
        %v643 = vunpack.c.h.b16 %v462
        %v644 = vunpack.c.l.b16 %v463
        %v645 = vunpack.c.h.b16 %v463
        %v646 = vunpack.c.l.b16 %v464
        %v647 = vunpack.c.h.b16 %v464
        %v648 = vunpack.c.l.b16 %v465
        %v649 = vunpack.c.h.b16 %v465
        %v650 = vunpack.c.l.b16 %v466
        %v651 = vunpack.c.h.b16 %v466
        %v652 = vunpack.c.l.b16 %v467
        %v653 = vunpack.c.h.b16 %v467
        %v654 = vunpack.c.l.b16 %v468
        %v655 = vunpack.c.h.b16 %v468
        %v656 = vunpack.c.l.b16 %v469
        %v657 = vunpack.c.h.b16 %v469
        %v658 = vunpack.c.l.b16 %v470
        %v659 = vunpack.c.h.b16 %v470
        %v660 = vunpack.c.l.b16 %v471
        %v661 = vunpack.c.h.b16 %v471
        %v662 = vunpack.c.l.b16 %v472
        %v663 = vunpack.c.h.b16 %v472
        %v664 = vunpack.c.l.b16 %v473
        %v665 = vunpack.c.h.b16 %v473
        %v666 = vunpack.c.l.b16 %v474
        %v667 = vunpack.c.h.b16 %v474
        %v668 = vunpack.c.l.b16 %v475
        %v669 = vunpack.c.h.b16 %v475
        %v670 = vunpack.c.l.b16 %v476
        %v671 = vunpack.c.h.b16 %v476
        %v672 = vunpack.c.l.b16 %v477
        %v673 = vunpack.c.h.b16 %v477
        %v674 = vunpack.c.l.b16 %v478
        %v675 = vunpack.c.h.b16 %v478
        %v676 = vunpack.c.l.b16 %v479
        %v677 = vunpack.c.h.b16 %v479
        %v678 = vunpack.c.l.b16 %v480
        %v679 = vunpack.c.h.b16 %v480
        %v680 = vunpack.c.l.b16 %v481
        %v681 = vunpack.c.h.b16 %v481
        %v682 = vunpack.c.l.b16 %v482
        %v683 = vunpack.c.h.b16 %v482
        %v684 = vunpack.c.l.b16 %v483
        %v685 = vunpack.c.h.b16 %v483
        %v686 = vunpack.c.l.b16 %v484
        %v687 = vunpack.c.h.b16 %v484
        %v688 = vunpack.c.l.b16 %v485
        %v689 = vunpack.c.h.b16 %v485
        %v690 = vunpack.c.l.b16 %v486
        %v691 = vunpack.c.h.b16 %v486
        %v692 = vunpack.c.l.b16 %v487
        %v693 = vunpack.c.h.b16 %v487
        %v694 = vunpack.c.l.b16 %v488
        %v695 = vunpack.c.h.b16 %v488
        %v696 = vunpack.c.l.b16 %v489
        %v697 = vunpack.c.h.b16 %v489
        %v698 = vunpack.c.l.b16 %v490
        %v699 = vunpack.c.h.b16 %v490
        %v700 = vunpack.c.l.b16 %v491
        %v701 = vunpack.c.h.b16 %v491
        %v702 = vunpack.c.l.b16 %v492
        %v703 = vunpack.c.h.b16 %v492
        %v704 = vunpack.c.l.b16 %v493
        %v705 = vunpack.c.h.b16 %v493
        %v706 = vunpack.c.l.b16 %v494
        %v707 = vunpack.c.h.b16 %v494
        %v708 = vunpack.c.l.b16 %v495
        %v709 = vunpack.c.h.b16 %v495
        %v710 = vpack.c.b16 %v586, %v582
        %v711 = vpack.c.b16 %v587, %v583
        %v712 = vpack.c.b16 %v588, %v584
        %v713 = vpack.c.b16 %v589, %v585
        %v714 = vpack.c.b16 %v594, %v590
        %v715 = vpack.c.b16 %v595, %v591
        %v716 = vpack.c.b16 %v596, %v592
        %v717 = vpack.c.b16 %v597, %v593
        %v718 = vpack.c.b16 %v602, %v598
        %v719 = vpack.c.b16 %v603, %v599
        %v720 = vpack.c.b16 %v604, %v600
        %v721 = vpack.c.b16 %v605, %v601
        %v722 = vpack.c.b16 %v610, %v606
        %v723 = vpack.c.b16 %v611, %v607
        %v724 = vpack.c.b16 %v612, %v608
        %v725 = vpack.c.b16 %v613, %v609
        %v726 = vpack.c.b16 %v618, %v614
        %v727 = vpack.c.b16 %v619, %v615
        %v728 = vpack.c.b16 %v620, %v616
        %v729 = vpack.c.b16 %v621, %v617
        %v730 = vpack.c.b16 %v626, %v622
        %v731 = vpack.c.b16 %v627, %v623
        %v732 = vpack.c.b16 %v628, %v624
        %v733 = vpack.c.b16 %v629, %v625
        %v734 = vpack.c.b16 %v634, %v630
        %v735 = vpack.c.b16 %v635, %v631
        %v736 = vpack.c.b16 %v636, %v632
        %v737 = vpack.c.b16 %v637, %v633
        %v738 = vpack.c.b16 %v642, %v638
        %v739 = vpack.c.b16 %v643, %v639
        %v740 = vpack.c.b16 %v644, %v640
        %v741 = vpack.c.b16 %v645, %v641
        %v742 = vpack.c.b16 %v650, %v646
        %v743 = vpack.c.b16 %v651, %v647
        %v744 = vpack.c.b16 %v652, %v648
        %v745 = vpack.c.b16 %v653, %v649
        %v746 = vpack.c.b16 %v658, %v654
        %v747 = vpack.c.b16 %v659, %v655
        %v748 = vpack.c.b16 %v660, %v656
        %v749 = vpack.c.b16 %v661, %v657
        %v750 = vpack.c.b16 %v666, %v662
        %v751 = vpack.c.b16 %v667, %v663
        %v752 = vpack.c.b16 %v668, %v664
        %v753 = vpack.c.b16 %v669, %v665
        %v754 = vpack.c.b16 %v674, %v670
        %v755 = vpack.c.b16 %v675, %v671
        %v756 = vpack.c.b16 %v676, %v672
        %v757 = vpack.c.b16 %v677, %v673
        %v758 = vpack.c.b16 %v682, %v678
        %v759 = vpack.c.b16 %v683, %v679
        %v760 = vpack.c.b16 %v684, %v680
        %v761 = vpack.c.b16 %v685, %v681
        %v762 = vpack.c.b16 %v690, %v686
        %v763 = vpack.c.b16 %v691, %v687
        %v764 = vpack.c.b16 %v692, %v688
        %v765 = vpack.c.b16 %v693, %v689
        %v766 = vpack.c.b16 %v698, %v694
        %v767 = vpack.c.b16 %v699, %v695
        %v768 = vpack.c.b16 %v700, %v696
        %v769 = vpack.c.b16 %v701, %v697
        %v770 = vpack.c.b16 %v706, %v702
        %v771 = vpack.c.b16 %v707, %v703
        %v772 = vpack.c.b16 %v708, %v704
        %v773 = vpack.c.b16 %v709, %v705
        %838 = vmatprep.subr.bf16.mxu0 %v711
        %839 = vmatpush1.bf16.msra.mxu0 %v710
        %840 = vmatprep.subr.bf16.mxu0 %v715
        %841 = vmatpush1.bf16.msra.mxu0 %v714
        %842 = vmatprep.subr.bf16.mxu0 %v719
        %843 = vmatpush1.bf16.msra.mxu0 %v718
        %844 = vmatprep.subr.bf16.mxu0 %v723
        %845 = vmatpush1.bf16.msra.mxu0 %v722
        %846 = vmatprep.subr.bf16.mxu0 %v727
        %847 = vmatpush1.bf16.msra.mxu0 %v726
        %848 = vmatprep.subr.bf16.mxu0 %v731
        %849 = vmatpush1.bf16.msra.mxu0 %v730
        %850 = vmatprep.subr.bf16.mxu0 %v735
        %851 = vmatpush1.bf16.msra.mxu0 %v734
        %852 = vmatprep.subr.bf16.mxu0 %v739
        %853 = vmatpush1.bf16.msra.mxu0 %v738
        %854 = vmatprep.subr.bf16.mxu0 %v743
        %855 = vmatpush1.bf16.msra.mxu0 %v742
        %856 = vmatprep.subr.bf16.mxu0 %v747
        %857 = vmatpush1.bf16.msra.mxu0 %v746
        %858 = vmatprep.subr.bf16.mxu0 %v751
        %859 = vmatpush1.bf16.msra.mxu0 %v750
        %860 = vmatprep.subr.bf16.mxu0 %v755
        %861 = vmatpush1.bf16.msra.mxu0 %v754
        %862 = vmatprep.subr.bf16.mxu0 %v759
        %863 = vmatpush1.bf16.msra.mxu0 %v758
        %864 = vmatprep.subr.bf16.mxu0 %v763
        %865 = vmatpush1.bf16.msra.mxu0 %v762
        %866 = vmatprep.subr.bf16.mxu0 %v767
        %867 = vmatpush1.bf16.msra.mxu0 %v766
        %868 = vmatprep.subr.bf16.mxu0 %v771
        %869 = vmatpush1.bf16.msra.mxu0 %v770
        %870 = vmatprep.mubr.bf16.mxu0 %v413
        %871 = vmatmul.mubr.bf16.gmra.mrb[0].mxu0 %v412
        %v872 = vpop.f32.mrb[0].mxu0
        %v873 = vadd.f32 %v501, %v872
        %v874 = vpop.f32.mrb[0].mxu0
        %v875 = vadd.f32 %v505, %v874
        %v876 = vpop.f32.mrb[0].mxu0
        %v877 = vadd.f32 %v501, %v876
        %v878 = vpop.f32.mrb[0].mxu0
        %v879 = vadd.f32 %v505, %v878
        %880 = vmatprep.mubr.bf16.mxu0 %v415
        %881 = vmatmul.mubr.bf16.gmra.mrb[0].mxu0 %v414
        %v882 = vpop.f32.mrb[0].mxu0
        %v883 = vadd.f32 %v501, %v882
        %v884 = vpop.f32.mrb[0].mxu0
        %v885 = vadd.f32 %v505, %v884
        %v886 = vpop.f32.mrb[0].mxu0
        %v887 = vadd.f32 %v501, %v886
        %v888 = vpop.f32.mrb[0].mxu0
        %v889 = vadd.f32 %v505, %v888
        %890 = vmatprep.mubr.bf16.mxu0 %v417
        %891 = vmatmul.mubr.bf16.gmra.mrb[0].mxu0 %v416
        %v892 = vpop.f32.mrb[0].mxu0
        %v893 = vadd.f32 %v501, %v892
        %v894 = vpop.f32.mrb[0].mxu0
        %v895 = vadd.f32 %v505, %v894
        %v896 = vpop.f32.mrb[0].mxu0
        %v897 = vadd.f32 %v501, %v896
        %v898 = vpop.f32.mrb[0].mxu0
        %v899 = vadd.f32 %v505, %v898
        %900 = vmatprep.mubr.bf16.mxu0 %v419
        %901 = vmatmul.mubr.bf16.gmra.mrb[0].mxu0 %v418
        %v902 = vpop.f32.mrb[0].mxu0
        %v903 = vadd.f32 %v501, %v902
        %v904 = vpop.f32.mrb[0].mxu0
        %v905 = vadd.f32 %v505, %v904
        %v906 = vpop.f32.mrb[0].mxu0
        %v907 = vadd.f32 %v501, %v906
        %v908 = vpop.f32.mrb[0].mxu0
        %v909 = vadd.f32 %v505, %v908
        %910 = vmatprep.mubr.bf16.mxu0 %v421
        %911 = vmatmul.mubr.bf16.gmra.mrb[0].mxu0 %v420
        %v912 = vpop.f32.mrb[0].mxu0
        %v913 = vadd.f32 %v501, %v912
        %v914 = vpop.f32.mrb[0].mxu0
        %v915 = vadd.f32 %v505, %v914
        %v916 = vpop.f32.mrb[0].mxu0
        %v917 = vadd.f32 %v501, %v916
        %v918 = vpop.f32.mrb[0].mxu0
        %v919 = vadd.f32 %v505, %v918
        %920 = vmatprep.mubr.bf16.mxu0 %v423
        %921 = vmatmul.mubr.bf16.gmra.mrb[0].mxu0 %v422
        %v922 = vpop.f32.mrb[0].mxu0
        %v923 = vadd.f32 %v501, %v922
        %v924 = vpop.f32.mrb[0].mxu0
        %v925 = vadd.f32 %v505, %v924
        %v926 = vpop.f32.mrb[0].mxu0
        %v927 = vadd.f32 %v501, %v926
        %v928 = vpop.f32.mrb[0].mxu0
        %v929 = vadd.f32 %v505, %v928
        %930 = vmatprep.mubr.bf16.mxu0 %v425
        %931 = vmatmul.mubr.bf16.gmra.mrb[0].mxu0 %v424
        %v932 = vpop.f32.mrb[0].mxu0
        %v933 = vadd.f32 %v501, %v932
        %v934 = vpop.f32.mrb[0].mxu0
        %v935 = vadd.f32 %v505, %v934
        %v936 = vpop.f32.mrb[0].mxu0
        %v937 = vadd.f32 %v501, %v936
        %v938 = vpop.f32.mrb[0].mxu0
        %v939 = vadd.f32 %v505, %v938
        %940 = vmatprep.mubr.bf16.mxu0 %v427
        %941 = vmatmul.mubr.bf16.gmra.mrb[0].mxu0 %v426
        %v942 = vpop.f32.mrb[0].mxu0
        %v943 = vadd.f32 %v501, %v942
        %v944 = vpop.f32.mrb[0].mxu0
        %v945 = vadd.f32 %v505, %v944
        %v946 = vpop.f32.mrb[0].mxu0
        %v947 = vadd.f32 %v501, %v946
        %v948 = vpop.f32.mrb[0].mxu0
        %v949 = vadd.f32 %v505, %v948
        %950 = vmatprep.mubr.bf16.mxu0 %v429
        %951 = vmatmul.mubr.bf16.gmra.mrb[0].mxu0 %v428
        %v952 = vpop.f32.mrb[0].mxu0
        %v953 = vadd.f32 %v501, %v952
        %v954 = vpop.f32.mrb[0].mxu0
        %v955 = vadd.f32 %v505, %v954
        %v956 = vpop.f32.mrb[0].mxu0
        %v957 = vadd.f32 %v501, %v956
        %v958 = vpop.f32.mrb[0].mxu0
        %v959 = vadd.f32 %v505, %v958
        %960 = vmatprep.mubr.bf16.mxu0 %v431
        %961 = vmatmul.mubr.bf16.gmra.mrb[0].mxu0 %v430
        %v962 = vpop.f32.mrb[0].mxu0
        %v963 = vadd.f32 %v501, %v962
        %v964 = vpop.f32.mrb[0].mxu0
        %v965 = vadd.f32 %v505, %v964
        %v966 = vpop.f32.mrb[0].mxu0
        %v967 = vpop.f32.mrb[0].mxu0
        %968 = vdwg.mxu0
        %969 = vmatprep.subr.bf16.mxu0 %v713
        %970 = vmatpush1.bf16.msra.mxu0 %v712
        %971 = vmatprep.subr.bf16.mxu0 %v717
        %972 = vmatpush1.bf16.msra.mxu0 %v716
        %973 = vmatprep.subr.bf16.mxu0 %v721
        %974 = vmatpush1.bf16.msra.mxu0 %v720
        %975 = vmatprep.subr.bf16.mxu0 %v725
        %976 = vmatpush1.bf16.msra.mxu0 %v724
        %977 = vmatprep.subr.bf16.mxu0 %v729
        %978 = vmatpush1.bf16.msra.mxu0 %v728
        %979 = vmatprep.subr.bf16.mxu0 %v733
        %980 = vmatpush1.bf16.msra.mxu0 %v732
        %981 = vmatprep.subr.bf16.mxu0 %v737
        %982 = vmatpush1.bf16.msra.mxu0 %v736
        %983 = vmatprep.subr.bf16.mxu0 %v741
        %984 = vmatpush1.bf16.msra.mxu0 %v740
        %985 = vmatprep.subr.bf16.mxu0 %v745
        %986 = vmatpush1.bf16.msra.mxu0 %v744
        %987 = vmatprep.subr.bf16.mxu0 %v749
        %988 = vmatpush1.bf16.msra.mxu0 %v748
        %989 = vmatprep.subr.bf16.mxu0 %v753
        %990 = vmatpush1.bf16.msra.mxu0 %v752
        %991 = vmatprep.subr.bf16.mxu0 %v757
        %992 = vmatpush1.bf16.msra.mxu0 %v756
        %993 = vmatprep.subr.bf16.mxu0 %v761
        %994 = vmatpush1.bf16.msra.mxu0 %v760
        %995 = vmatprep.subr.bf16.mxu0 %v765
        %996 = vmatpush1.bf16.msra.mxu0 %v764
        %997 = vmatprep.subr.bf16.mxu0 %v769
        %998 = vmatpush1.bf16.msra.mxu0 %v768
        %999 = vmatprep.subr.bf16.mxu0 %v773
        %1000 = vmatpush1.bf16.msra.mxu0 %v772
        %1001 = vmatprep.mubr.bf16.mxu0 %v413
        %1002 = vmatmul.mubr.bf16.gmra.mrb[0].mxu0 %v412
        %v1003 = vpop.f32.mrb[0].mxu0
        %v1004 = vadd.f32 %v509, %v1003
        %v1005 = vpop.f32.mrb[0].mxu0
        %v1006 = vadd.f32 %v513, %v1005
        %v1007 = vpop.f32.mrb[0].mxu0
        %v1008 = vadd.f32 %v509, %v1007
        %v1009 = vpop.f32.mrb[0].mxu0
        %v1010 = vadd.f32 %v513, %v1009
        %1011 = vmatprep.mubr.bf16.mxu0 %v415
        %1012 = vmatmul.mubr.bf16.gmra.mrb[0].mxu0 %v414
        %v1013 = vpop.f32.mrb[0].mxu0
        %v1014 = vadd.f32 %v509, %v1013
        %v1015 = vpop.f32.mrb[0].mxu0
        %v1016 = vadd.f32 %v513, %v1015
        %v1017 = vpop.f32.mrb[0].mxu0
        %v1018 = vadd.f32 %v509, %v1017
        %v1019 = vpop.f32.mrb[0].mxu0
        %v1020 = vadd.f32 %v513, %v1019
        %1021 = vmatprep.mubr.bf16.mxu0 %v417
        %1022 = vmatmul.mubr.bf16.gmra.mrb[0].mxu0 %v416
        %v1023 = vpop.f32.mrb[0].mxu0
        %v1024 = vadd.f32 %v509, %v1023
        %v1025 = vpop.f32.mrb[0].mxu0
        %v1026 = vadd.f32 %v513, %v1025
        %v1027 = vpop.f32.mrb[0].mxu0
        %v1028 = vadd.f32 %v509, %v1027
        %v1029 = vpop.f32.mrb[0].mxu0
        %v1030 = vadd.f32 %v513, %v1029
        %1031 = vmatprep.mubr.bf16.mxu0 %v419
        %1032 = vmatmul.mubr.bf16.gmra.mrb[0].mxu0 %v418
        %v1033 = vpop.f32.mrb[0].mxu0
        %v1034 = vadd.f32 %v509, %v1033
        %v1035 = vpop.f32.mrb[0].mxu0
        %v1036 = vadd.f32 %v513, %v1035
        %v1037 = vpop.f32.mrb[0].mxu0
        %v1038 = vadd.f32 %v509, %v1037
        %v1039 = vpop.f32.mrb[0].mxu0
        %v1040 = vadd.f32 %v513, %v1039
        %1041 = vmatprep.mubr.bf16.mxu0 %v421
        %1042 = vmatmul.mubr.bf16.gmra.mrb[0].mxu0 %v420
        %v1043 = vpop.f32.mrb[0].mxu0
        %v1044 = vadd.f32 %v509, %v1043
        %v1045 = vpop.f32.mrb[0].mxu0
        %v1046 = vadd.f32 %v513, %v1045
        %v1047 = vpop.f32.mrb[0].mxu0
        %v1048 = vadd.f32 %v509, %v1047
        %v1049 = vpop.f32.mrb[0].mxu0
        %v1050 = vadd.f32 %v513, %v1049
        %1051 = vmatprep.mubr.bf16.mxu0 %v423
        %1052 = vmatmul.mubr.bf16.gmra.mrb[0].mxu0 %v422
        %v1053 = vpop.f32.mrb[0].mxu0
        %v1054 = vadd.f32 %v509, %v1053
        %v1055 = vpop.f32.mrb[0].mxu0
        %v1056 = vadd.f32 %v513, %v1055
        %v1057 = vpop.f32.mrb[0].mxu0
        %v1058 = vadd.f32 %v509, %v1057
        %v1059 = vpop.f32.mrb[0].mxu0
        %v1060 = vadd.f32 %v513, %v1059
        %1061 = vmatprep.mubr.bf16.mxu0 %v425
        %1062 = vmatmul.mubr.bf16.gmra.mrb[0].mxu0 %v424
        %v1063 = vpop.f32.mrb[0].mxu0
        %v1064 = vadd.f32 %v509, %v1063
        %v1065 = vpop.f32.mrb[0].mxu0
        %v1066 = vadd.f32 %v513, %v1065
        %v1067 = vpop.f32.mrb[0].mxu0
        %v1068 = vadd.f32 %v509, %v1067
        %v1069 = vpop.f32.mrb[0].mxu0
        %v1070 = vadd.f32 %v513, %v1069
        %1071 = vmatprep.mubr.bf16.mxu0 %v427
        %1072 = vmatmul.mubr.bf16.gmra.mrb[0].mxu0 %v426
        %v1073 = vpop.f32.mrb[0].mxu0
        %v1074 = vadd.f32 %v509, %v1073
        %v1075 = vpop.f32.mrb[0].mxu0
        %v1076 = vadd.f32 %v513, %v1075
        %v1077 = vpop.f32.mrb[0].mxu0
        %v1078 = vadd.f32 %v509, %v1077
        %v1079 = vpop.f32.mrb[0].mxu0
        %v1080 = vadd.f32 %v513, %v1079
        %1081 = vmatprep.mubr.bf16.mxu0 %v429
        %1082 = vmatmul.mubr.bf16.gmra.mrb[0].mxu0 %v428
        %v1083 = vpop.f32.mrb[0].mxu0
        %v1084 = vadd.f32 %v509, %v1083
        %v1085 = vpop.f32.mrb[0].mxu0
        %v1086 = vadd.f32 %v513, %v1085
        %v1087 = vpop.f32.mrb[0].mxu0
        %v1088 = vadd.f32 %v509, %v1087
        %v1089 = vpop.f32.mrb[0].mxu0
        %v1090 = vadd.f32 %v513, %v1089
        %1091 = vmatprep.mubr.bf16.mxu0 %v431
        %1092 = vmatmul.mubr.bf16.gmra.mrb[0].mxu0 %v430
        %v1093 = vpop.f32.mrb[0].mxu0
        %v1094 = vadd.f32 %v509, %v1093
        %v1095 = vpop.f32.mrb[0].mxu0
        %v1096 = vadd.f32 %v513, %v1095
        %v1097 = vpop.f32.mrb[0].mxu0
        %v1098 = vpop.f32.mrb[0].mxu0
        %1099 = vdwg.mxu0
        %v1100 = vmax.f32 %v873, 0.0
        %v1101 = vmax.f32 %v875, 0.0
        %v1102 = vmax.f32 %v1004, 0.0
        %v1103 = vmax.f32 %v1006, 0.0
        %v1104 = vmax.f32 %v877, 0.0
        %v1105 = vmax.f32 %v879, 0.0
        %v1106 = vmax.f32 %v1008, 0.0
        %v1107 = vmax.f32 %v1010, 0.0
        %v1108 = vmax.f32 %v883, 0.0
        %v1109 = vmax.f32 %v885, 0.0
        %v1110 = vmax.f32 %v1014, 0.0
        %v1111 = vmax.f32 %v1016, 0.0
        %v1112 = vmax.f32 %v887, 0.0
        %v1113 = vmax.f32 %v889, 0.0
        %v1114 = vmax.f32 %v1018, 0.0
        %v1115 = vmax.f32 %v1020, 0.0
        %v1116 = vmax.f32 %v893, 0.0
        %v1117 = vmax.f32 %v895, 0.0
        %v1118 = vmax.f32 %v1024, 0.0
        %v1119 = vmax.f32 %v1026, 0.0
        %v1120 = vmax.f32 %v897, 0.0
        %v1121 = vmax.f32 %v899, 0.0
        %v1122 = vmax.f32 %v1028, 0.0
        %v1123 = vmax.f32 %v1030, 0.0
        %v1124 = vmax.f32 %v903, 0.0
        %v1125 = vmax.f32 %v905, 0.0
        %v1126 = vmax.f32 %v1034, 0.0
        %v1127 = vmax.f32 %v1036, 0.0
        %v1128 = vmax.f32 %v907, 0.0
        %v1129 = vmax.f32 %v909, 0.0
        %v1130 = vmax.f32 %v1038, 0.0
        %v1131 = vmax.f32 %v1040, 0.0
        %v1132 = vmax.f32 %v913, 0.0
        %v1133 = vmax.f32 %v915, 0.0
        %v1134 = vmax.f32 %v1044, 0.0
        %v1135 = vmax.f32 %v1046, 0.0
        %v1136 = vmax.f32 %v917, 0.0
        %v1137 = vmax.f32 %v919, 0.0
        %v1138 = vmax.f32 %v1048, 0.0
        %v1139 = vmax.f32 %v1050, 0.0
        %v1140 = vmax.f32 %v923, 0.0
        %v1141 = vmax.f32 %v925, 0.0
        %v1142 = vmax.f32 %v1054, 0.0
        %v1143 = vmax.f32 %v1056, 0.0
        %v1144 = vmax.f32 %v927, 0.0
        %v1145 = vmax.f32 %v929, 0.0
        %v1146 = vmax.f32 %v1058, 0.0
        %v1147 = vmax.f32 %v1060, 0.0
        %v1148 = vmax.f32 %v933, 0.0
        %v1149 = vmax.f32 %v935, 0.0
        %v1150 = vmax.f32 %v1064, 0.0
        %v1151 = vmax.f32 %v1066, 0.0
        %v1152 = vmax.f32 %v937, 0.0
        %v1153 = vmax.f32 %v939, 0.0
        %v1154 = vmax.f32 %v1068, 0.0
        %v1155 = vmax.f32 %v1070, 0.0
        %v1156 = vmax.f32 %v943, 0.0
        %v1157 = vmax.f32 %v945, 0.0
        %v1158 = vmax.f32 %v1074, 0.0
        %v1159 = vmax.f32 %v1076, 0.0
        %v1160 = vmax.f32 %v947, 0.0
        %v1161 = vmax.f32 %v949, 0.0
        %v1162 = vmax.f32 %v1078, 0.0
        %v1163 = vmax.f32 %v1080, 0.0
        %v1164 = vmax.f32 %v953, 0.0
        %v1165 = vmax.f32 %v955, 0.0
        %v1166 = vmax.f32 %v1084, 0.0
        %v1167 = vmax.f32 %v1086, 0.0
        %v1168 = vmax.f32 %v957, 0.0
        %v1169 = vmax.f32 %v959, 0.0
        %v1170 = vmax.f32 %v1088, 0.0
        %v1171 = vmax.f32 %v1090, 0.0
        %v1172 = vmax.f32 %v963, 0.0
        %v1173 = vmax.f32 %v965, 0.0
        %v1174 = vmax.f32 %v1094, 0.0
        %v1175 = vmax.f32 %v1096, 0.0
        %v1176 = vpack.c.bf16 %v1104, %v1100
        %v1177 = vpack.c.bf16 %v1105, %v1101
        %v1178 = vpack.c.bf16 %v1106, %v1102
        %v1179 = vpack.c.bf16 %v1107, %v1103
        %v1180 = vpack.c.bf16 %v1112, %v1108
        %v1181 = vpack.c.bf16 %v1113, %v1109
        %v1182 = vpack.c.bf16 %v1114, %v1110
        %v1183 = vpack.c.bf16 %v1115, %v1111
        %v1184 = vpack.c.bf16 %v1120, %v1116
        %v1185 = vpack.c.bf16 %v1121, %v1117
        %v1186 = vpack.c.bf16 %v1122, %v1118
        %v1187 = vpack.c.bf16 %v1123, %v1119
        %v1188 = vpack.c.bf16 %v1128, %v1124
        %v1189 = vpack.c.bf16 %v1129, %v1125
        %v1190 = vpack.c.bf16 %v1130, %v1126
        %v1191 = vpack.c.bf16 %v1131, %v1127
        %v1192 = vpack.c.bf16 %v1136, %v1132
        %v1193 = vpack.c.bf16 %v1137, %v1133
        %v1194 = vpack.c.bf16 %v1138, %v1134
        %v1195 = vpack.c.bf16 %v1139, %v1135
        %v1196 = vpack.c.bf16 %v1144, %v1140
        %v1197 = vpack.c.bf16 %v1145, %v1141
        %v1198 = vpack.c.bf16 %v1146, %v1142
        %v1199 = vpack.c.bf16 %v1147, %v1143
        %v1200 = vpack.c.bf16 %v1152, %v1148
        %v1201 = vpack.c.bf16 %v1153, %v1149
        %v1202 = vpack.c.bf16 %v1154, %v1150
        %v1203 = vpack.c.bf16 %v1155, %v1151
        %v1204 = vpack.c.bf16 %v1160, %v1156
        %v1205 = vpack.c.bf16 %v1161, %v1157
        %v1206 = vpack.c.bf16 %v1162, %v1158
        %v1207 = vpack.c.bf16 %v1163, %v1159
        %v1208 = vpack.c.bf16 %v1168, %v1164
        %v1209 = vpack.c.bf16 %v1169, %v1165
        %v1210 = vpack.c.bf16 %v1170, %v1166
        %v1211 = vpack.c.bf16 %v1171, %v1167
        %v1212 = vpack.c.bf16 %v1172, %v1172
        %v1213 = vpack.c.bf16 %v1173, %v1173
        %v1214 = vpack.c.bf16 %v1174, %v1174
        %v1215 = vpack.c.bf16 %v1175, %v1175
        %v1216 = vld [vmem:[#allocation7] sm:$0xff]
        %v1217 = vld [vmem:[#allocation7 + $0x8] sm:$0xff]
        %v1218 = vld [vmem:[#allocation7 + $0x10] sm:$0xff]
        %v1219 = vld [vmem:[#allocation7 + $0x18] sm:$0xff]
        %v1220 = vld [vmem:[#allocation7 + $0x20] sm:$0xff]
        %v1221 = vld [vmem:[#allocation7 + $0x28] sm:$0xff]
        %v1222 = vld [vmem:[#allocation7 + $0x30] sm:$0xff]
        %v1223 = vld [vmem:[#allocation7 + $0x38] sm:$0xff]
        %v1224 = vld [vmem:[#allocation7 + $0x40] sm:$0xff]
        %v1225 = vld [vmem:[#allocation7 + $0x48] sm:$0xff]
        %v1226 = vld [vmem:[#allocation7 + $0x50] sm:$0xff]
        %v1227 = vld [vmem:[#allocation7 + $0x58] sm:$0xff]
        %v1228 = vld [vmem:[#allocation7 + $0x60] sm:$0xff]
        %v1229 = vld [vmem:[#allocation7 + $0x68] sm:$0xff]
        %v1230 = vld [vmem:[#allocation7 + $0x70] sm:$0xff]
        %v1231 = vld [vmem:[#allocation7 + $0x78] sm:$0xff]
        %v1232 = vld [vmem:[#allocation7 + $0x80] sm:$0xff]
        %v1233 = vld [vmem:[#allocation7 + $0x88] sm:$0xff]
        %v1234 = vld [vmem:[#allocation7 + $0x90] sm:$0xff]
        %v1235 = vld [vmem:[#allocation7 + $0x98] sm:$0xff]
        %v1236 = vld [vmem:[#allocation7 + $0xa0] sm:$0xff]
        %v1237 = vld [vmem:[#allocation7 + $0xa8] sm:$0xff]
        %v1238 = vld [vmem:[#allocation7 + $0xb0] sm:$0xff]
        %v1239 = vld [vmem:[#allocation7 + $0xb8] sm:$0xff]
        %v1240 = vld [vmem:[#allocation7 + $0xc0] sm:$0xff]
        %v1241 = vld [vmem:[#allocation7 + $0xc8] sm:$0xff]
        %v1242 = vld [vmem:[#allocation7 + $0xd0] sm:$0xff]
        %v1243 = vld [vmem:[#allocation7 + $0xd8] sm:$0xff]
        %v1244 = vld [vmem:[#allocation7 + $0xe0] sm:$0xff]
        %v1245 = vld [vmem:[#allocation7 + $0xe8] sm:$0xff]
        %v1246 = vld [vmem:[#allocation7 + $0xf0] sm:$0xff]
        %v1247 = vld [vmem:[#allocation7 + $0xf8] sm:$0xff]
        %v1248 = vld [vmem:[#allocation7 + $0x100] sm:$0xff]
        %v1249 = vld [vmem:[#allocation7 + $0x108] sm:$0xff]
        %v1250 = vld [vmem:[#allocation7 + $0x110] sm:$0xff]
        %v1251 = vld [vmem:[#allocation7 + $0x118] sm:$0xff]
        %v1252 = vld [vmem:[#allocation7 + $0x120] sm:$0xff]
        %v1253 = vld [vmem:[#allocation7 + $0x128] sm:$0xff]
        %v1254 = vld [vmem:[#allocation7 + $0x130] sm:$0xff]
        %v1255 = vld [vmem:[#allocation7 + $0x138] sm:$0xff]
        %v1256 = vld [vmem:[#allocation7 + $0x140] sm:$0xff]
        %v1257 = vld [vmem:[#allocation7 + $0x148] sm:$0xff]
        %v1258 = vld [vmem:[#allocation7 + $0x150] sm:$0xff]
        %v1259 = vld [vmem:[#allocation7 + $0x158] sm:$0xff]
        %v1260 = vld [vmem:[#allocation7 + $0x160] sm:$0xff]
        %v1261 = vld [vmem:[#allocation7 + $0x168] sm:$0xff]
        %v1262 = vld [vmem:[#allocation7 + $0x170] sm:$0xff]
        %v1263 = vld [vmem:[#allocation7 + $0x178] sm:$0xff]
        %v1264 = vld [vmem:[#allocation7 + $0x180] sm:$0xff]
        %v1265 = vld [vmem:[#allocation7 + $0x188] sm:$0xff]
        %v1266 = vld [vmem:[#allocation7 + $0x190] sm:$0xff]
        %v1267 = vld [vmem:[#allocation7 + $0x198] sm:$0xff]
        %v1268 = vld [vmem:[#allocation7 + $0x1a0] sm:$0xff]
        %v1269 = vld [vmem:[#allocation7 + $0x1a8] sm:$0xff]
        %v1270 = vld [vmem:[#allocation7 + $0x1b0] sm:$0xff]
        %v1271 = vld [vmem:[#allocation7 + $0x1b8] sm:$0xff]
        %v1272 = vld [vmem:[#allocation7 + $0x1c0] sm:$0xff]
        %v1273 = vld [vmem:[#allocation7 + $0x1c8] sm:$0xff]
        %v1274 = vld [vmem:[#allocation7 + $0x1d0] sm:$0xff]
        %v1275 = vld [vmem:[#allocation7 + $0x1d8] sm:$0xff]
        %v1276 = vld [vmem:[#allocation7 + $0x1e0] sm:$0xff]
        %v1277 = vld [vmem:[#allocation7 + $0x1e8] sm:$0xff]
        %v1278 = vld [vmem:[#allocation7 + $0x1f0] sm:$0xff]
        %v1279 = vld [vmem:[#allocation7 + $0x1f8] sm:$0xff]
        %v1344 = vunpack.c.l.b16 %v1216
        %v1345 = vunpack.c.h.b16 %v1216
        %v1346 = vunpack.c.l.b16 %v1217
        %v1347 = vunpack.c.h.b16 %v1217
        %v1348 = vunpack.c.l.b16 %v1218
        %v1349 = vunpack.c.h.b16 %v1218
        %v1350 = vunpack.c.l.b16 %v1219
        %v1351 = vunpack.c.h.b16 %v1219
        %v1352 = vunpack.c.l.b16 %v1220
        %v1353 = vunpack.c.h.b16 %v1220
        %v1354 = vunpack.c.l.b16 %v1221
        %v1355 = vunpack.c.h.b16 %v1221
        %v1356 = vunpack.c.l.b16 %v1222
        %v1357 = vunpack.c.h.b16 %v1222
        %v1358 = vunpack.c.l.b16 %v1223
        %v1359 = vunpack.c.h.b16 %v1223
        %v1360 = vunpack.c.l.b16 %v1224
        %v1361 = vunpack.c.h.b16 %v1224
        %v1362 = vunpack.c.l.b16 %v1225
        %v1363 = vunpack.c.h.b16 %v1225
        %v1364 = vunpack.c.l.b16 %v1226
        %v1365 = vunpack.c.h.b16 %v1226
        %v1366 = vunpack.c.l.b16 %v1227
        %v1367 = vunpack.c.h.b16 %v1227
        %v1368 = vunpack.c.l.b16 %v1228
        %v1369 = vunpack.c.h.b16 %v1228
        %v1370 = vunpack.c.l.b16 %v1229
        %v1371 = vunpack.c.h.b16 %v1229
        %v1372 = vunpack.c.l.b16 %v1230
        %v1373 = vunpack.c.h.b16 %v1230
        %v1374 = vunpack.c.l.b16 %v1231
        %v1375 = vunpack.c.h.b16 %v1231
        %v1376 = vunpack.c.l.b16 %v1232
        %v1377 = vunpack.c.h.b16 %v1232
        %v1378 = vunpack.c.l.b16 %v1233
        %v1379 = vunpack.c.h.b16 %v1233
        %v1380 = vunpack.c.l.b16 %v1234
        %v1381 = vunpack.c.h.b16 %v1234
        %v1382 = vunpack.c.l.b16 %v1235
        %v1383 = vunpack.c.h.b16 %v1235
        %v1384 = vunpack.c.l.b16 %v1236
        %v1385 = vunpack.c.h.b16 %v1236
        %v1386 = vunpack.c.l.b16 %v1237
        %v1387 = vunpack.c.h.b16 %v1237
        %v1388 = vunpack.c.l.b16 %v1238
        %v1389 = vunpack.c.h.b16 %v1238
        %v1390 = vunpack.c.l.b16 %v1239
        %v1391 = vunpack.c.h.b16 %v1239
        %v1392 = vunpack.c.l.b16 %v1240
        %v1393 = vunpack.c.h.b16 %v1240
        %v1394 = vunpack.c.l.b16 %v1241
        %v1395 = vunpack.c.h.b16 %v1241
        %v1396 = vunpack.c.l.b16 %v1242
        %v1397 = vunpack.c.h.b16 %v1242
        %v1398 = vunpack.c.l.b16 %v1243
        %v1399 = vunpack.c.h.b16 %v1243
        %v1400 = vunpack.c.l.b16 %v1244
        %v1401 = vunpack.c.h.b16 %v1244
        %v1402 = vunpack.c.l.b16 %v1245
        %v1403 = vunpack.c.h.b16 %v1245
        %v1404 = vunpack.c.l.b16 %v1246
        %v1405 = vunpack.c.h.b16 %v1246
        %v1406 = vunpack.c.l.b16 %v1247
        %v1407 = vunpack.c.h.b16 %v1247
        %v1408 = vunpack.c.l.b16 %v1248
        %v1409 = vunpack.c.h.b16 %v1248
        %v1410 = vunpack.c.l.b16 %v1249
        %v1411 = vunpack.c.h.b16 %v1249
        %v1412 = vunpack.c.l.b16 %v1250
        %v1413 = vunpack.c.h.b16 %v1250
        %v1414 = vunpack.c.l.b16 %v1251
        %v1415 = vunpack.c.h.b16 %v1251
        %v1416 = vunpack.c.l.b16 %v1252
        %v1417 = vunpack.c.h.b16 %v1252
        %v1418 = vunpack.c.l.b16 %v1253
        %v1419 = vunpack.c.h.b16 %v1253
        %v1420 = vunpack.c.l.b16 %v1254
        %v1421 = vunpack.c.h.b16 %v1254
        %v1422 = vunpack.c.l.b16 %v1255
        %v1423 = vunpack.c.h.b16 %v1255
        %v1424 = vunpack.c.l.b16 %v1256
        %v1425 = vunpack.c.h.b16 %v1256
        %v1426 = vunpack.c.l.b16 %v1257
        %v1427 = vunpack.c.h.b16 %v1257
        %v1428 = vunpack.c.l.b16 %v1258
        %v1429 = vunpack.c.h.b16 %v1258
        %v1430 = vunpack.c.l.b16 %v1259
        %v1431 = vunpack.c.h.b16 %v1259
        %v1432 = vunpack.c.l.b16 %v1260
        %v1433 = vunpack.c.h.b16 %v1260
        %v1434 = vunpack.c.l.b16 %v1261
        %v1435 = vunpack.c.h.b16 %v1261
        %v1436 = vunpack.c.l.b16 %v1262
        %v1437 = vunpack.c.h.b16 %v1262
        %v1438 = vunpack.c.l.b16 %v1263
        %v1439 = vunpack.c.h.b16 %v1263
        %v1440 = vunpack.c.l.b16 %v1264
        %v1441 = vunpack.c.h.b16 %v1264
        %v1442 = vunpack.c.l.b16 %v1265
        %v1443 = vunpack.c.h.b16 %v1265
        %v1444 = vunpack.c.l.b16 %v1266
        %v1445 = vunpack.c.h.b16 %v1266
        %v1446 = vunpack.c.l.b16 %v1267
        %v1447 = vunpack.c.h.b16 %v1267
        %v1448 = vunpack.c.l.b16 %v1268
        %v1449 = vunpack.c.h.b16 %v1268
        %v1450 = vunpack.c.l.b16 %v1269
        %v1451 = vunpack.c.h.b16 %v1269
        %v1452 = vunpack.c.l.b16 %v1270
        %v1453 = vunpack.c.h.b16 %v1270
        %v1454 = vunpack.c.l.b16 %v1271
        %v1455 = vunpack.c.h.b16 %v1271
        %v1456 = vunpack.c.l.b16 %v1272
        %v1457 = vunpack.c.h.b16 %v1272
        %v1458 = vunpack.c.l.b16 %v1273
        %v1459 = vunpack.c.h.b16 %v1273
        %v1460 = vunpack.c.l.b16 %v1274
        %v1461 = vunpack.c.h.b16 %v1274
        %v1462 = vunpack.c.l.b16 %v1275
        %v1463 = vunpack.c.h.b16 %v1275
        %v1464 = vunpack.c.l.b16 %v1276
        %v1465 = vunpack.c.h.b16 %v1276
        %v1466 = vunpack.c.l.b16 %v1277
        %v1467 = vunpack.c.h.b16 %v1277
        %v1468 = vunpack.c.l.b16 %v1278
        %v1469 = vunpack.c.h.b16 %v1278
        %v1470 = vunpack.c.l.b16 %v1279
        %v1471 = vunpack.c.h.b16 %v1279
        %v1472 = vpack.c.b16 %v1346, %v1344
        %v1473 = vpack.c.b16 %v1347, %v1345
        %v1474 = vpack.c.b16 %v1350, %v1348
        %v1475 = vpack.c.b16 %v1351, %v1349
        %v1476 = vpack.c.b16 %v1354, %v1352
        %v1477 = vpack.c.b16 %v1355, %v1353
        %v1478 = vpack.c.b16 %v1358, %v1356
        %v1479 = vpack.c.b16 %v1359, %v1357
        %v1480 = vpack.c.b16 %v1362, %v1360
        %v1481 = vpack.c.b16 %v1363, %v1361
        %v1482 = vpack.c.b16 %v1366, %v1364
        %v1483 = vpack.c.b16 %v1367, %v1365
        %v1484 = vpack.c.b16 %v1370, %v1368
        %v1485 = vpack.c.b16 %v1371, %v1369
        %v1486 = vpack.c.b16 %v1374, %v1372
        %v1487 = vpack.c.b16 %v1375, %v1373
        %v1488 = vpack.c.b16 %v1378, %v1376
        %v1489 = vpack.c.b16 %v1379, %v1377
        %v1490 = vpack.c.b16 %v1382, %v1380
        %v1491 = vpack.c.b16 %v1383, %v1381
        %v1492 = vpack.c.b16 %v1386, %v1384
        %v1493 = vpack.c.b16 %v1387, %v1385
        %v1494 = vpack.c.b16 %v1390, %v1388
        %v1495 = vpack.c.b16 %v1391, %v1389
        %v1496 = vpack.c.b16 %v1394, %v1392
        %v1497 = vpack.c.b16 %v1395, %v1393
        %v1498 = vpack.c.b16 %v1398, %v1396
        %v1499 = vpack.c.b16 %v1399, %v1397
        %v1500 = vpack.c.b16 %v1402, %v1400
        %v1501 = vpack.c.b16 %v1403, %v1401
        %v1502 = vpack.c.b16 %v1406, %v1404
        %v1503 = vpack.c.b16 %v1407, %v1405
        %v1504 = vpack.c.b16 %v1410, %v1408
        %v1505 = vpack.c.b16 %v1411, %v1409
        %v1506 = vpack.c.b16 %v1414, %v1412
        %v1507 = vpack.c.b16 %v1415, %v1413
        %v1508 = vpack.c.b16 %v1418, %v1416
        %v1509 = vpack.c.b16 %v1419, %v1417
        %v1510 = vpack.c.b16 %v1422, %v1420
        %v1511 = vpack.c.b16 %v1423, %v1421
        %v1512 = vpack.c.b16 %v1426, %v1424
        %v1513 = vpack.c.b16 %v1427, %v1425
        %v1514 = vpack.c.b16 %v1430, %v1428
        %v1515 = vpack.c.b16 %v1431, %v1429
        %v1516 = vpack.c.b16 %v1434, %v1432
        %v1517 = vpack.c.b16 %v1435, %v1433
        %v1518 = vpack.c.b16 %v1438, %v1436
        %v1519 = vpack.c.b16 %v1439, %v1437
        %v1520 = vpack.c.b16 %v1442, %v1440
        %v1521 = vpack.c.b16 %v1443, %v1441
        %v1522 = vpack.c.b16 %v1446, %v1444
        %v1523 = vpack.c.b16 %v1447, %v1445
        %v1524 = vpack.c.b16 %v1450, %v1448
        %v1525 = vpack.c.b16 %v1451, %v1449
        %v1526 = vpack.c.b16 %v1454, %v1452
        %v1527 = vpack.c.b16 %v1455, %v1453
        %v1528 = vpack.c.b16 %v1458, %v1456
        %v1529 = vpack.c.b16 %v1459, %v1457
        %v1530 = vpack.c.b16 %v1462, %v1460
        %v1531 = vpack.c.b16 %v1463, %v1461
        %v1532 = vpack.c.b16 %v1466, %v1464
        %v1533 = vpack.c.b16 %v1467, %v1465
        %v1534 = vpack.c.b16 %v1470, %v1468
        %v1535 = vpack.c.b16 %v1471, %v1469
        %1600 = vmatprep.subr.bf16.mxu0 %v1473
        %1601 = vmatpush1.bf16.msra.mxu0 %v1472
        %1602 = vmatprep.subr.bf16.mxu0 %v1475
        %1603 = vmatpush1.bf16.msra.mxu0 %v1474
        %1604 = vmatprep.subr.bf16.mxu0 %v1477
        %1605 = vmatpush1.bf16.msra.mxu0 %v1476
        %1606 = vmatprep.subr.bf16.mxu0 %v1479
        %1607 = vmatpush1.bf16.msra.mxu0 %v1478
        %1608 = vmatprep.subr.bf16.mxu0 %v1481
        %1609 = vmatpush1.bf16.msra.mxu0 %v1480
        %1610 = vmatprep.subr.bf16.mxu0 %v1483
        %1611 = vmatpush1.bf16.msra.mxu0 %v1482
        %1612 = vmatprep.subr.bf16.mxu0 %v1485
        %1613 = vmatpush1.bf16.msra.mxu0 %v1484
        %1614 = vmatprep.subr.bf16.mxu0 %v1487
        %1615 = vmatpush1.bf16.msra.mxu0 %v1486
        %1616 = vmatprep.subr.bf16.mxu0 %v1489
        %1617 = vmatpush1.bf16.msra.mxu0 %v1488
        %1618 = vmatprep.subr.bf16.mxu0 %v1491
        %1619 = vmatpush1.bf16.msra.mxu0 %v1490
        %1620 = vmatprep.subr.bf16.mxu0 %v1493
        %1621 = vmatpush1.bf16.msra.mxu0 %v1492
        %1622 = vmatprep.subr.bf16.mxu0 %v1495
        %1623 = vmatpush1.bf16.msra.mxu0 %v1494
        %1624 = vmatprep.subr.bf16.mxu0 %v1497
        %1625 = vmatpush1.bf16.msra.mxu0 %v1496
        %1626 = vmatprep.subr.bf16.mxu0 %v1499
        %1627 = vmatpush1.bf16.msra.mxu0 %v1498
        %1628 = vmatprep.subr.bf16.mxu0 %v1501
        %1629 = vmatpush1.bf16.msra.mxu0 %v1500
        %1630 = vmatprep.subr.bf16.mxu0 %v1503
        %1631 = vmatpush1.bf16.msra.mxu0 %v1502
        %1632 = vmatprep.mubr.bf16.mxu0 %v1177
        %1633 = vmatmul.mubr.bf16.gmra.mrb[0].mxu0 %v1176
        %v1634 = vpop.f32.mrb[0].mxu0
        %v1635 = vadd.f32 0.0, %v1634
        %v1636 = vpop.f32.mrb[0].mxu0
        %v1637 = vadd.f32 0.0, %v1636
        %v1638 = vpop.f32.mrb[0].mxu0
        %v1639 = vadd.f32 0.0, %v1638
        %v1640 = vpop.f32.mrb[0].mxu0
        %v1641 = vadd.f32 0.0, %v1640
        %1642 = vmatprep.mubr.bf16.mxu0 %v1181
        %1643 = vmatmul.mubr.bf16.gmra.mrb[0].mxu0 %v1180
        %v1644 = vpop.f32.mrb[0].mxu0
        %v1645 = vadd.f32 0.0, %v1644
        %v1646 = vpop.f32.mrb[0].mxu0
        %v1647 = vadd.f32 0.0, %v1646
        %v1648 = vpop.f32.mrb[0].mxu0
        %v1649 = vadd.f32 0.0, %v1648
        %v1650 = vpop.f32.mrb[0].mxu0
        %v1651 = vadd.f32 0.0, %v1650
        %1652 = vmatprep.mubr.bf16.mxu0 %v1185
        %1653 = vmatmul.mubr.bf16.gmra.mrb[0].mxu0 %v1184
        %v1654 = vpop.f32.mrb[0].mxu0
        %v1655 = vadd.f32 0.0, %v1654
        %v1656 = vpop.f32.mrb[0].mxu0
        %v1657 = vadd.f32 0.0, %v1656
        %v1658 = vpop.f32.mrb[0].mxu0
        %v1659 = vadd.f32 0.0, %v1658
        %v1660 = vpop.f32.mrb[0].mxu0
        %v1661 = vadd.f32 0.0, %v1660
        %1662 = vmatprep.mubr.bf16.mxu0 %v1189
        %1663 = vmatmul.mubr.bf16.gmra.mrb[0].mxu0 %v1188
        %v1664 = vpop.f32.mrb[0].mxu0
        %v1665 = vadd.f32 0.0, %v1664
        %v1666 = vpop.f32.mrb[0].mxu0
        %v1667 = vadd.f32 0.0, %v1666
        %v1668 = vpop.f32.mrb[0].mxu0
        %v1669 = vadd.f32 0.0, %v1668
        %v1670 = vpop.f32.mrb[0].mxu0
        %v1671 = vadd.f32 0.0, %v1670
        %1672 = vmatprep.mubr.bf16.mxu0 %v1193
        %1673 = vmatmul.mubr.bf16.gmra.mrb[0].mxu0 %v1192
        %v1674 = vpop.f32.mrb[0].mxu0
        %v1675 = vadd.f32 0.0, %v1674
        %v1676 = vpop.f32.mrb[0].mxu0
        %v1677 = vadd.f32 0.0, %v1676
        %v1678 = vpop.f32.mrb[0].mxu0
        %v1679 = vadd.f32 0.0, %v1678
        %v1680 = vpop.f32.mrb[0].mxu0
        %v1681 = vadd.f32 0.0, %v1680
        %1682 = vmatprep.mubr.bf16.mxu0 %v1197
        %1683 = vmatmul.mubr.bf16.gmra.mrb[0].mxu0 %v1196
        %v1684 = vpop.f32.mrb[0].mxu0
        %v1685 = vadd.f32 0.0, %v1684
        %v1686 = vpop.f32.mrb[0].mxu0
        %v1687 = vadd.f32 0.0, %v1686
        %v1688 = vpop.f32.mrb[0].mxu0
        %v1689 = vadd.f32 0.0, %v1688
        %v1690 = vpop.f32.mrb[0].mxu0
        %v1691 = vadd.f32 0.0, %v1690
        %1692 = vmatprep.mubr.bf16.mxu0 %v1201
        %1693 = vmatmul.mubr.bf16.gmra.mrb[0].mxu0 %v1200
        %v1694 = vpop.f32.mrb[0].mxu0
        %v1695 = vadd.f32 0.0, %v1694
        %v1696 = vpop.f32.mrb[0].mxu0
        %v1697 = vadd.f32 0.0, %v1696
        %v1698 = vpop.f32.mrb[0].mxu0
        %v1699 = vadd.f32 0.0, %v1698
        %v1700 = vpop.f32.mrb[0].mxu0
        %v1701 = vadd.f32 0.0, %v1700
        %1702 = vmatprep.mubr.bf16.mxu0 %v1205
        %1703 = vmatmul.mubr.bf16.gmra.mrb[0].mxu0 %v1204
        %v1704 = vpop.f32.mrb[0].mxu0
        %v1705 = vadd.f32 0.0, %v1704
        %v1706 = vpop.f32.mrb[0].mxu0
        %v1707 = vadd.f32 0.0, %v1706
        %v1708 = vpop.f32.mrb[0].mxu0
        %v1709 = vadd.f32 0.0, %v1708
        %v1710 = vpop.f32.mrb[0].mxu0
        %v1711 = vadd.f32 0.0, %v1710
        %1712 = vmatprep.mubr.bf16.mxu0 %v1209
        %1713 = vmatmul.mubr.bf16.gmra.mrb[0].mxu0 %v1208
        %v1714 = vpop.f32.mrb[0].mxu0
        %v1715 = vadd.f32 0.0, %v1714
        %v1716 = vpop.f32.mrb[0].mxu0
        %v1717 = vadd.f32 0.0, %v1716
        %v1718 = vpop.f32.mrb[0].mxu0
        %v1719 = vadd.f32 0.0, %v1718
        %v1720 = vpop.f32.mrb[0].mxu0
        %v1721 = vadd.f32 0.0, %v1720
        %1722 = vmatprep.mubr.bf16.mxu0 %v1213
        %1723 = vmatmul.mubr.bf16.gmra.mrb[0].mxu0 %v1212
        %v1724 = vpop.f32.mrb[0].mxu0
        %v1725 = vadd.f32 0.0, %v1724
        %v1726 = vpop.f32.mrb[0].mxu0
        %v1727 = vadd.f32 0.0, %v1726
        %v1728 = vpop.f32.mrb[0].mxu0
        %v1729 = vpop.f32.mrb[0].mxu0
        %1730 = vdwg.mxu0
        %1731 = vmatprep.subr.bf16.mxu0 %v1505
        %1732 = vmatpush1.bf16.msra.mxu0 %v1504
        %1733 = vmatprep.subr.bf16.mxu0 %v1507
        %1734 = vmatpush1.bf16.msra.mxu0 %v1506
        %1735 = vmatprep.subr.bf16.mxu0 %v1509
        %1736 = vmatpush1.bf16.msra.mxu0 %v1508
        %1737 = vmatprep.subr.bf16.mxu0 %v1511
        %1738 = vmatpush1.bf16.msra.mxu0 %v1510
        %1739 = vmatprep.subr.bf16.mxu0 %v1513
        %1740 = vmatpush1.bf16.msra.mxu0 %v1512
        %1741 = vmatprep.subr.bf16.mxu0 %v1515
        %1742 = vmatpush1.bf16.msra.mxu0 %v1514
        %1743 = vmatprep.subr.bf16.mxu0 %v1517
        %1744 = vmatpush1.bf16.msra.mxu0 %v1516
        %1745 = vmatprep.subr.bf16.mxu0 %v1519
        %1746 = vmatpush1.bf16.msra.mxu0 %v1518
        %1747 = vmatprep.subr.bf16.mxu0 %v1521
        %1748 = vmatpush1.bf16.msra.mxu0 %v1520
        %1749 = vmatprep.subr.bf16.mxu0 %v1523
        %1750 = vmatpush1.bf16.msra.mxu0 %v1522
        %1751 = vmatprep.subr.bf16.mxu0 %v1525
        %1752 = vmatpush1.bf16.msra.mxu0 %v1524
        %1753 = vmatprep.subr.bf16.mxu0 %v1527
        %1754 = vmatpush1.bf16.msra.mxu0 %v1526
        %1755 = vmatprep.subr.bf16.mxu0 %v1529
        %1756 = vmatpush1.bf16.msra.mxu0 %v1528
        %1757 = vmatprep.subr.bf16.mxu0 %v1531
        %1758 = vmatpush1.bf16.msra.mxu0 %v1530
        %1759 = vmatprep.subr.bf16.mxu0 %v1533
        %1760 = vmatpush1.bf16.msra.mxu0 %v1532
        %1761 = vmatprep.subr.bf16.mxu0 %v1535
        %1762 = vmatpush1.bf16.msra.mxu0 %v1534
        %1763 = vmatprep.mubr.bf16.mxu0 %v1179
        %1764 = vmatmul.mubr.bf16.gmra.mrb[0].mxu0 %v1178
        %v1765 = vpop.f32.mrb[0].mxu0
        %v1766 = vadd.f32 %v1635, %v1765
        %v1767 = vpop.f32.mrb[0].mxu0
        %v1768 = vadd.f32 %v1637, %v1767
        %v1769 = vpop.f32.mrb[0].mxu0
        %v1770 = vadd.f32 %v1639, %v1769
        %v1771 = vpop.f32.mrb[0].mxu0
        %v1772 = vadd.f32 %v1641, %v1771
        %1773 = vmatprep.mubr.bf16.mxu0 %v1183
        %1774 = vmatmul.mubr.bf16.gmra.mrb[0].mxu0 %v1182
        %v1775 = vpop.f32.mrb[0].mxu0
        %v1776 = vadd.f32 %v1645, %v1775
        %v1777 = vpop.f32.mrb[0].mxu0
        %v1778 = vadd.f32 %v1647, %v1777
        %v1779 = vpop.f32.mrb[0].mxu0
        %v1780 = vadd.f32 %v1649, %v1779
        %v1781 = vpop.f32.mrb[0].mxu0
        %v1782 = vadd.f32 %v1651, %v1781
        %1783 = vmatprep.mubr.bf16.mxu0 %v1187
        %1784 = vmatmul.mubr.bf16.gmra.mrb[0].mxu0 %v1186
        %v1785 = vpop.f32.mrb[0].mxu0
        %v1786 = vadd.f32 %v1655, %v1785
        %v1787 = vpop.f32.mrb[0].mxu0
        %v1788 = vadd.f32 %v1657, %v1787
        %v1789 = vpop.f32.mrb[0].mxu0
        %v1790 = vadd.f32 %v1659, %v1789
        %v1791 = vpop.f32.mrb[0].mxu0
        %v1792 = vadd.f32 %v1661, %v1791
        %1793 = vmatprep.mubr.bf16.mxu0 %v1191
        %1794 = vmatmul.mubr.bf16.gmra.mrb[0].mxu0 %v1190
        %v1795 = vpop.f32.mrb[0].mxu0
        %v1796 = vadd.f32 %v1665, %v1795
        %v1797 = vpop.f32.mrb[0].mxu0
        %v1798 = vadd.f32 %v1667, %v1797
        %v1799 = vpop.f32.mrb[0].mxu0
        %v1800 = vadd.f32 %v1669, %v1799
        %v1801 = vpop.f32.mrb[0].mxu0
        %v1802 = vadd.f32 %v1671, %v1801
        %1803 = vmatprep.mubr.bf16.mxu0 %v1195
        %1804 = vmatmul.mubr.bf16.gmra.mrb[0].mxu0 %v1194
        %v1805 = vpop.f32.mrb[0].mxu0
        %v1806 = vadd.f32 %v1675, %v1805
        %v1807 = vpop.f32.mrb[0].mxu0
        %v1808 = vadd.f32 %v1677, %v1807
        %v1809 = vpop.f32.mrb[0].mxu0
        %v1810 = vadd.f32 %v1679, %v1809
        %v1811 = vpop.f32.mrb[0].mxu0
        %v1812 = vadd.f32 %v1681, %v1811
        %1813 = vmatprep.mubr.bf16.mxu0 %v1199
        %1814 = vmatmul.mubr.bf16.gmra.mrb[0].mxu0 %v1198
        %v1815 = vpop.f32.mrb[0].mxu0
        %v1816 = vadd.f32 %v1685, %v1815
        %v1817 = vpop.f32.mrb[0].mxu0
        %v1818 = vadd.f32 %v1687, %v1817
        %v1819 = vpop.f32.mrb[0].mxu0
        %v1820 = vadd.f32 %v1689, %v1819
        %v1821 = vpop.f32.mrb[0].mxu0
        %v1822 = vadd.f32 %v1691, %v1821
        %1823 = vmatprep.mubr.bf16.mxu0 %v1203
        %1824 = vmatmul.mubr.bf16.gmra.mrb[0].mxu0 %v1202
        %v1825 = vpop.f32.mrb[0].mxu0
        %v1826 = vadd.f32 %v1695, %v1825
        %v1827 = vpop.f32.mrb[0].mxu0
        %v1828 = vadd.f32 %v1697, %v1827
        %v1829 = vpop.f32.mrb[0].mxu0
        %v1830 = vadd.f32 %v1699, %v1829
        %v1831 = vpop.f32.mrb[0].mxu0
        %v1832 = vadd.f32 %v1701, %v1831
        %1833 = vmatprep.mubr.bf16.mxu0 %v1207
        %1834 = vmatmul.mubr.bf16.gmra.mrb[0].mxu0 %v1206
        %v1835 = vpop.f32.mrb[0].mxu0
        %v1836 = vadd.f32 %v1705, %v1835
        %v1837 = vpop.f32.mrb[0].mxu0
        %v1838 = vadd.f32 %v1707, %v1837
        %v1839 = vpop.f32.mrb[0].mxu0
        %v1840 = vadd.f32 %v1709, %v1839
        %v1841 = vpop.f32.mrb[0].mxu0
        %v1842 = vadd.f32 %v1711, %v1841
        %1843 = vmatprep.mubr.bf16.mxu0 %v1211
        %1844 = vmatmul.mubr.bf16.gmra.mrb[0].mxu0 %v1210
        %v1845 = vpop.f32.mrb[0].mxu0
        %v1846 = vadd.f32 %v1715, %v1845
        %v1847 = vpop.f32.mrb[0].mxu0
        %v1848 = vadd.f32 %v1717, %v1847
        %v1849 = vpop.f32.mrb[0].mxu0
        %v1850 = vadd.f32 %v1719, %v1849
        %v1851 = vpop.f32.mrb[0].mxu0
        %v1852 = vadd.f32 %v1721, %v1851
        %1853 = vmatprep.mubr.bf16.mxu0 %v1215
        %1854 = vmatmul.mubr.bf16.gmra.mrb[0].mxu0 %v1214
        %v1855 = vpop.f32.mrb[0].mxu0
        %v1856 = vadd.f32 %v1725, %v1855
        %v1857 = vpop.f32.mrb[0].mxu0
        %v1858 = vadd.f32 %v1727, %v1857
        %v1859 = vpop.f32.mrb[0].mxu0
        %v1860 = vpop.f32.mrb[0].mxu0
        %1861 = vdwg.mxu0
        %v1862 = vadd.f32 %v336, %v1766
        %v1863 = vadd.f32 %v337, %v1768
        %v1864 = vadd.f32 %v338, %v1770
        %v1865 = vadd.f32 %v339, %v1772
        %v1866 = vadd.f32 %v340, %v1776
        %v1867 = vadd.f32 %v341, %v1778
        %v1868 = vadd.f32 %v342, %v1780
        %v1869 = vadd.f32 %v343, %v1782
        %v1870 = vadd.f32 %v344, %v1786
        %v1871 = vadd.f32 %v345, %v1788
        %v1872 = vadd.f32 %v346, %v1790
        %v1873 = vadd.f32 %v347, %v1792
        %v1874 = vadd.f32 %v348, %v1796
        %v1875 = vadd.f32 %v349, %v1798
        %v1876 = vadd.f32 %v350, %v1800
        %v1877 = vadd.f32 %v351, %v1802
        %v1878 = vadd.f32 %v352, %v1806
        %v1879 = vadd.f32 %v353, %v1808
        %v1880 = vadd.f32 %v354, %v1810
        %v1881 = vadd.f32 %v355, %v1812
        %v1882 = vadd.f32 %v356, %v1816
        %v1883 = vadd.f32 %v357, %v1818
        %v1884 = vadd.f32 %v358, %v1820
        %v1885 = vadd.f32 %v359, %v1822
        %v1886 = vadd.f32 %v360, %v1826
        %v1887 = vadd.f32 %v361, %v1828
        %v1888 = vadd.f32 %v362, %v1830
        %v1889 = vadd.f32 %v363, %v1832
        %v1890 = vadd.f32 %v364, %v1836
        %v1891 = vadd.f32 %v365, %v1838
        %v1892 = vadd.f32 %v366, %v1840
        %v1893 = vadd.f32 %v367, %v1842
        %v1894 = vadd.f32 %v368, %v1846
        %v1895 = vadd.f32 %v369, %v1848
        %v1896 = vadd.f32 %v370, %v1850
        %v1897 = vadd.f32 %v371, %v1852
        %v1898 = vadd.f32 %v372, %v1856
        %v1899 = vadd.f32 %v373, %v1858
        %1900 = vst [vmem:[%s287] sm:$0xff] %v1862
        %1901 = vst [vmem:[%s287 + $0x8] sm:$0xff] %v1863
        %1902 = vst [vmem:[%s287 + $0x10] sm:$0xff] %v1864
        %1903 = vst [vmem:[%s287 + $0x18] sm:$0xff] %v1865
        %1904 = vst [vmem:[%s287 + $0x20] sm:$0xff] %v1866
        %1905 = vst [vmem:[%s287 + $0x28] sm:$0xff] %v1867
        %1906 = vst [vmem:[%s287 + $0x30] sm:$0xff] %v1868
        %1907 = vst [vmem:[%s287 + $0x38] sm:$0xff] %v1869
        %1908 = vst [vmem:[%s287 + $0x40] sm:$0xff] %v1870
        %1909 = vst [vmem:[%s287 + $0x48] sm:$0xff] %v1871
        %1910 = vst [vmem:[%s287 + $0x50] sm:$0xff] %v1872
        %1911 = vst [vmem:[%s287 + $0x58] sm:$0xff] %v1873
        %1912 = vst [vmem:[%s287 + $0x60] sm:$0xff] %v1874
        %1913 = vst [vmem:[%s287 + $0x68] sm:$0xff] %v1875
        %1914 = vst [vmem:[%s287 + $0x70] sm:$0xff] %v1876
        %1915 = vst [vmem:[%s287 + $0x78] sm:$0xff] %v1877
        %1916 = vst [vmem:[%s287 + $0x80] sm:$0xff] %v1878
        %1917 = vst [vmem:[%s287 + $0x88] sm:$0xff] %v1879
        %1918 = vst [vmem:[%s287 + $0x90] sm:$0xff] %v1880
        %1919 = vst [vmem:[%s287 + $0x98] sm:$0xff] %v1881
        %1920 = vst [vmem:[%s287 + $0xa0] sm:$0xff] %v1882
        %1921 = vst [vmem:[%s287 + $0xa8] sm:$0xff] %v1883
        %1922 = vst [vmem:[%s287 + $0xb0] sm:$0xff] %v1884
        %1923 = vst [vmem:[%s287 + $0xb8] sm:$0xff] %v1885
        %1924 = vst [vmem:[%s287 + $0xc0] sm:$0xff] %v1886
        %1925 = vst [vmem:[%s287 + $0xc8] sm:$0xff] %v1887
        %1926 = vst [vmem:[%s287 + $0xd0] sm:$0xff] %v1888
        %1927 = vst [vmem:[%s287 + $0xd8] sm:$0xff] %v1889
        %1928 = vst [vmem:[%s287 + $0xe0] sm:$0xff] %v1890
        %1929 = vst [vmem:[%s287 + $0xe8] sm:$0xff] %v1891
        %1930 = vst [vmem:[%s287 + $0xf0] sm:$0xff] %v1892
        %1931 = vst [vmem:[%s287 + $0xf8] sm:$0xff] %v1893
        %1932 = vst [vmem:[%s287 + $0x100] sm:$0xff] %v1894
        %1933 = vst [vmem:[%s287 + $0x108] sm:$0xff] %v1895
        %1934 = vst [vmem:[%s287 + $0x110] sm:$0xff] %v1896
        %1935 = vst [vmem:[%s287 + $0x118] sm:$0xff] %v1897
        %1936 = vst [vmem:[%s287 + $0x120] sm:$0xff] %v1898
        %1937 = vst [vmem:[%s287 + $0x128] sm:$0xff] %v1899
        %s1938 = sand.u32 %s152, 1
        %s1939 = scalar_lea.sflag [#allocation4], %s1938
        %s1940 = sand.u32 %s152, 1
        %s1941 = smul.addr %s1940, 304
        %s1942 = scalar_lea.vmem [#allocation8], %s1941
        // Predicated region
        $region53: #{tpu_custom_call.1} parent=35 // pred_check
          %p1943 = pneg %p162
        $region54: #{tpu_custom_call.1} parent=35 // pred_check_branch
          %1945 = sbr.rel (%p1943) target = $region56
        $region55: #{tpu_custom_call.1} parent=35 // pred_region
          %s1946 = smul.u32 19, %s27
          %s1947 = smul.u32 2, %s28
          %s1949 = ssub.s32 4864, 4864
          %1950 = vsyncadd %s1939, %s1949
          %s1951 = smul.addr %s1946, 2
          %s1952 = sadd.s32 %s1947, %s1951
          %s1953 = smul.addr %s1952, 128
          %s1954 = scalar_lea.hbm %s4, %s1953
          %s1955 = sshll.u32 %s1942, 4
          %s1956 = int_to_ptr.vmem [resolvable:$true] %s1955
          %1961 = dma.vmem_to_hbm [thread:$0]  %s1956, 4864, %s1954, %s1939, 256, 256, 16
        $region56: #{tpu_custom_call.1} parent=35 // pred_fallthru
          _
      $region36: #{tpu_custom_call.1} parent=5 // pred_fallthru
        _
      %p1962 = scmp.le.s32.totalorder 2, %s17
      // Predicated region
      $region57: #{tpu_custom_call.1} parent=5 // pred_check
        %p1963 = pneg %p1962
      $region58: #{tpu_custom_call.1} parent=5 // pred_check_branch
        %1965 = sbr.rel (%p1963) target = $region60
      $region59: #{tpu_custom_call.1} parent=5 // pred_region
        %s1966 = ssub.s32 %s17, 2
        // Predicated region
        $region61: #{tpu_custom_call.1} parent=59 // pred_check
          %p1967 = pneg %p168
        $region62: #{tpu_custom_call.1} parent=59 // pred_check_branch
          %1969 = sbr.rel (%p1967) target = $region64
        $region63: #{tpu_custom_call.1} parent=59 // pred_region
          %s1970 = sand.u32 %s153, 1
          %s1971 = scalar_lea.sflag [#allocation4], %s1970
          %s1972 = sand.u32 %s153, 1
          %s1973 = smul.addr %s1972, 304
          %s1974 = scalar_lea.vmem [#allocation8], %s1973
          %1975 = dma.done %s1971, 4864
        $region64: #{tpu_custom_call.1} parent=59 // pred_fallthru
          _
      $region60: #{tpu_custom_call.1} parent=5 // pred_fallthru
        _
    $region6: #{tpu_custom_call.1} parent=1 // loop_footer
      %s21 = sadd.s32 1, %s17
    $region7: #{tpu_custom_call.1} parent=1 // loop_footer_branch
      %16 = sbr.rel target = $region3
    $region8: #{tpu_custom_call.1} parent=1 // loop_exit
      _
    %1976 = vsyncpa [#allocation3], 1
    %s1977 = scalar_lea.sflag [#allocation3], 1
    %1978 = vsyncpa %s1977, 1
    %1979 = vsyncpa [#allocation6], 1
    %1980 = vsyncpa [#allocation4], 1
    %s1981 = scalar_lea.sflag [#allocation4], 1
    %1982 = vsyncpa %s1981, 1

</llo_original>
